<compile_context>
chip_gen: v6e
topology: v6e:2x2x1
jax: 0.10.0
libtpu: 0.0.40
codegen_flags: <defaults>
</compile_context>

<pallas_src>
import functools

import jax
import jax.numpy as jnp
from jax.experimental import pallas as pl
from jax.experimental.pallas import tpu as pltpu

LANE = 128          # MXU-N / lane width
SUBLANE_BF16 = 16   # bf16 sublane packing


def _round_up(x, m):
    return ((x + m - 1) // m) * m


def _pad2d(a, rows, cols, fill=0.0):
    r, c = a.shape
    return jnp.pad(a, ((0, rows - r), (0, cols - c)), constant_values=fill)


@functools.lru_cache(maxsize=1)
def _vmem_limit_bytes():
    """Generation-aware VMEM cap: 3/4 of physical (v5e/v6e 128 MiB, v7x 64 MiB)."""
    try:
        cap = int(pltpu.get_tpu_info().vmem_capacity_bytes)
    except Exception:
        cap = 64 * 1024 * 1024      # conservative (v7x-sized) fallback
    return cap * 3 // 4


def _choose_node_tiling(n):
    """Pick the node row-tile size TM and padded node count NP.

    >=256-row tiles for full MXU M occupancy on large graphs; at least two
    tiles when the graph allows so the "parallel" grid axis can be sharded
    across the two TensorCores of a v7x chip (harmless no-op on v5e/v6e).
    """
    if n >= 512:
        tm = 256
    elif n > SUBLANE_BF16:
        tm = _round_up((n + 1) // 2, SUBLANE_BF16)   # two row tiles
    else:
        tm = SUBLANE_BF16
    return tm, _round_up(n, tm)


# ----------------------------------------------------------------------------
# Kernels (row-tiled over nodes)
# ----------------------------------------------------------------------------
def gin_conv1_kernel(a_ref, x_ref, w1_ref, w2_ref, vec_ref, h1_ref):
    """GINConv 1 for one node-row tile.

    BN (eval) scale is pre-folded into W1's columns; vec row 0 holds the folded
    (Linear-1 bias + BN shift), vec row 1 holds the Linear-2 bias.
    """
    # Neighbor aggregation + (1+eps)*self (folded into A_hat) -> MXU matmul.
    agg = jnp.dot(a_ref[...], x_ref[...], preferred_element_type=jnp.float32)
    h = jnp.dot(agg.astype(jnp.bfloat16), w1_ref[...],
                preferred_element_type=jnp.float32)
    h = jnp.maximum(h + vec_ref[0:1, :], 0.0)          # BN(eval) + ReLU
    h = jnp.dot(h.astype(jnp.bfloat16), w2_ref[...],
                preferred_element_type=jnp.float32)
    h = jnp.maximum(h + vec_ref[1:2, :], 0.0)          # Linear2 + ReLU
    # F.dropout(..., training=False) between the convs is identity in eval mode.
    # TODO(synk): training-mode dropout needs pltpu.prng_seed/prng_random_bits.
    h1_ref[...] = h.astype(h1_ref.dtype)


def gin_conv2_fc_kernel(a_ref, h1_ref, w1_ref, w2_ref, fcw_ref, vec_ref,
                        fcb_ref, o_ref):
    """GINConv 2 + fc1 + log_softmax for one node-row tile."""
    agg = jnp.dot(a_ref[...], h1_ref[...], preferred_element_type=jnp.float32)
    h = jnp.dot(agg.astype(jnp.bfloat16), w1_ref[...],
                preferred_element_type=jnp.float32)
    h = jnp.maximum(h + vec_ref[0:1, :], 0.0)
    h = jnp.dot(h.astype(jnp.bfloat16), w2_ref[...],
                preferred_element_type=jnp.float32)
    h2 = jnp.maximum(h + vec_ref[1:2, :], 0.0)
    # fc1 + log_softmax.  Padded class columns carry a -1e30 bias so their
    # exp() underflows to exactly 0 and real-class results are unchanged.
    z = jnp.dot(h2.astype(jnp.bfloat16), fcw_ref[...],
                preferred_element_type=jnp.float32) + fcb_ref[...]
    m = jnp.max(z, axis=1, keepdims=True)
    lse = jnp.log(jnp.sum(jnp.exp(z - m), axis=1, keepdims=True))
    o_ref[...] = z - m - lse


# ----------------------------------------------------------------------------
# One-time parameter / graph preparation (hoisted out of the forward path)
# ----------------------------------------------------------------------------
def prepare_params(params):
    """Pad, cast and fold all weights once.

    - BN (eval) scale folded into W1 columns; Linear-1 bias folded into shift.
    - Per-layer row vectors packed into one [8, dpad] f32 slab (single DMA).
    - Only the lane dims feeding MXU-N / output stores are padded to 128.
    """
    f = params["c1_w1"].shape[0]
    dim = params["c1_w2"].shape[1]
    ncls = params["fc_w"].shape[1]
    fpad = _round_up(f, SUBLANE_BF16)   # pure K dim -> no need for 128
    dpad = _round_up(dim, LANE)
    cpad = _round_up(ncls, LANE)

    bf = jnp.bfloat16
    c1w1 = _pad2d(params["c1_w1"] * params["c1_bn_scale"], fpad, dpad).astype(bf)
    c2w1 = _pad2d(params["c2_w1"] * params["c2_bn_scale"], dpad, dpad).astype(bf)
    c1w2 = _pad2d(params["c1_w2"], dpad, dpad).astype(bf)
    c2w2 = _pad2d(params["c2_w2"], dpad, dpad).astype(bf)
    fcw = _pad2d(params["fc_w"], dpad, cpad).astype(bf)

    c1t = params["c1_b1"] * params["c1_bn_scale"] + params["c1_bn_shift"]
    c2t = params["c2_b1"] * params["c2_bn_scale"] + params["c2_bn_shift"]
    c1vec = jnp.zeros((8, dpad), jnp.float32)
    c1vec = c1vec.at[0, :dim].set(c1t[0]).at[1, :dim].set(params["c1_b2"][0])
    c2vec = jnp.zeros((8, dpad), jnp.float32)
    c2vec = c2vec.at[0, :dim].set(c2t[0]).at[1, :dim].set(params["c2_b2"][0])
    fcb = _pad2d(params["fc_b"], 1, cpad, fill=-1e30)

    prep = dict(c1w1=c1w1, c1w2=c1w2, c1vec=c1vec,
                c2w1=c2w1, c2w2=c2w2, c2vec=c2vec,
                fcw=fcw, fcb=fcb)
    dims = dict(fpad=fpad, dpad=dpad, cpad=cpad, dim=dim, num_classes=ncls)
    return prep, dims


def prepare_graph(x, a_hat, fpad, npad):
    """Pad / cast the (static per graph) node features and adjacency once."""
    x_p = _pad2d(x, npad, fpad).astype(jnp.bfloat16)
    a_p = _pad2d(a_hat, npad, npad).astype(jnp.bfloat16)
    return x_p, a_p


# ----------------------------------------------------------------------------
# Jitted forward: two row-tiled pallas_calls
# ----------------------------------------------------------------------------
@functools.partial(jax.jit, static_argnames=("tm",))
def gin_forward_padded(prep, x_p, a_p, *, tm):
    npad = a_p.shape[0]
    fpad = x_p.shape[1]
    dpad = prep["c1w2"].shape[0]
    cpad = prep["fcw"].shape[1]
    grid = (npad // tm,)
    cp = pltpu.CompilerParams(dimension_semantics=("parallel",),
                              vmem_limit_bytes=_vmem_limit_bytes())

    # --- GINConv 1: A_hat row tiles pipelined, x / weights VMEM-resident ----
    h1 = pl.pallas_call(
        gin_conv1_kernel,
        out_shape=jax.ShapeDtypeStruct((npad, dpad), jnp.bfloat16),
        grid=grid,
        in_specs=[
            pl.BlockSpec((tm, npad), lambda i: (i, 0)),     # A_hat row tile
            pl.BlockSpec((npad, fpad), lambda i: (0, 0)),   # x (resident)
            pl.BlockSpec((fpad, dpad), lambda i: (0, 0)),   # W1 (BN folded)
            pl.BlockSpec((dpad, dpad), lambda i: (0, 0)),   # W2
            pl.BlockSpec((8, dpad), lambda i: (0, 0)),      # packed row vectors
        ],
        out_specs=pl.BlockSpec((tm, dpad), lambda i: (i, 0)),
        compiler_params=cp,
    )(a_p, x_p, prep["c1w1"], prep["c1w2"], prep["c1vec"])

    # --- GINConv 2 + fc1 + log_softmax: h1 VMEM-resident ---------------------
    out_p = pl.pallas_call(
        gin_conv2_fc_kernel,
        out_shape=jax.ShapeDtypeStruct((npad, cpad), jnp.float32),
        grid=grid,
        in_specs=[
            pl.BlockSpec((tm, npad), lambda i: (i, 0)),     # A_hat row tile
            pl.BlockSpec((npad, dpad), lambda i: (0, 0)),   # h1 (resident, bf16)
            pl.BlockSpec((dpad, dpad), lambda i: (0, 0)),   # W1 (BN folded)
            pl.BlockSpec((dpad, dpad), lambda i: (0, 0)),   # W2
            pl.BlockSpec((dpad, cpad), lambda i: (0, 0)),   # fc weight
            pl.BlockSpec((8, dpad), lambda i: (0, 0)),      # packed row vectors
            pl.BlockSpec((1, cpad), lambda i: (0, 0)),      # fc bias (padded -1e30)
        ],
        out_specs=pl.BlockSpec((tm, cpad), lambda i: (i, 0)),
        compiler_params=cp,
    )(a_p, h1, prep["c2w1"], prep["c2w2"], prep["fcw"], prep["c2vec"],
      prep["fcb"])
    return out_p


# ----------------------------------------------------------------------------
# Model: deterministic parameter init + graph construction
# ----------------------------------------------------------------------------
def init_linear(key, fan_in, fan_out):
    """PyTorch-style uniform(-1/sqrt(fan_in), 1/sqrt(fan_in)) init."""
    kw, kb = jax.random.split(key)
    bound = 1.0 / jnp.sqrt(jnp.float32(fan_in))
    w = jax.random.uniform(kw, (fan_in, fan_out), jnp.float32, -bound, bound)
    b = jax.random.uniform(kb, (1, fan_out), jnp.float32, -bound, bound)
    return w, b


def init_gin_params(key, in_channels, dim, num_classes):
    keys = jax.random.split(key, 5)
    params = {}
    # conv1 MLP: Linear(in, dim), BN(dim), ReLU, Linear(dim, dim), ReLU
    params["c1_w1"], params["c1_b1"] = init_linear(keys[0], in_channels, dim)
    params["c1_w2"], params["c1_b2"] = init_linear(keys[1], dim, dim)
    # conv2 MLP: Linear(dim, dim), BN(dim), ReLU, Linear(dim, dim), ReLU
    params["c2_w1"], params["c2_b1"] = init_linear(keys[2], dim, dim)
    params["c2_w2"], params["c2_b2"] = init_linear(keys[3], dim, dim)
    # fc1
    params["fc_w"], params["fc_b"] = init_linear(keys[4], dim, num_classes)
    # BatchNorm1d defaults (eval): gamma=1, beta=0, mean=0, var=1, eps=1e-5
    bn_eps = 1e-5
    gamma = jnp.ones((1, dim), jnp.float32)
    beta = jnp.zeros((1, dim), jnp.float32)
    rmean = jnp.zeros((1, dim), jnp.float32)
    rvar = jnp.ones((1, dim), jnp.float32)
    scale = gamma / jnp.sqrt(rvar + bn_eps)
    shift = beta - rmean * scale
    params["c1_bn_scale"] = scale
    params["c1_bn_shift"] = shift
    params["c2_bn_scale"] = scale
    params["c2_bn_shift"] = shift
    return params


def build_a_hat(edge_index, num_nodes, eps=0.0):
    """Dense adjacency (messages src -> dst) plus (1+eps)*I self term."""
    src, dst = edge_index[0], edge_index[1]
    a = jnp.zeros((num_nodes, num_nodes), jnp.float32)
    a = a.at[dst, src].add(1.0)
    return a + (1.0 + eps) * jnp.eye(num_nodes, dtype=jnp.float32)


# ----------------------------------------------------------------------------
# Main
# ----------------------------------------------------------------------------
if __name__ == "__main__":
    N = 64            # number of nodes
    E = 256           # number of directed edges
    IN_CH = 8         # dataset['num_node_features']
    DIM = 32          # args.dim_size
    NUM_CLASSES = 4   # dataset['num_classes']

    key = jax.random.PRNGKey(0)
    k_x, k_e, k_p = jax.random.split(key, 3)

    x = jax.random.normal(k_x, (N, IN_CH), jnp.float32)
    edge_index = jax.random.randint(k_e, (2, E), 0, N, jnp.int32)

    params = init_gin_params(k_p, IN_CH, DIM, NUM_CLASSES)
    a_hat = build_a_hat(edge_index, N, eps=0.0)

    # One-time prep: padding / casting / BN folding hoisted out of the forward.
    prep, dims = prepare_params(params)
    tm, npad = _choose_node_tiling(N)
    x_p, a_p = prepare_graph(x, a_hat, dims["fpad"], npad)

    out_p = gin_forward_padded(prep, x_p, a_p, tm=tm)
    out_p = jax.block_until_ready(out_p)
    out = out_p[:N, :NUM_CLASSES]

    assert out.shape == (N, NUM_CLASSES)
    assert out.dtype == jnp.float32
    # log_softmax rows must (approximately) exponentiate-sum to 1.
    row_sums = jnp.sum(jnp.exp(out), axis=1)
    assert bool(jnp.all(jnp.abs(row_sums - 1.0) < 1e-4))
    assert bool(jnp.all(jnp.isfinite(out)))

    print("KERNEL_OK")
</pallas_src>

<mosaic_0001>
module attributes {stable_mosaic.version = 11 : i64} {
  func.func @gin_conv2_fc_kernel(%arg0: i32, %arg1: memref<32x64xbf16, #tpu.memory_space<vmem>>, %arg2: memref<64x128xbf16, #tpu.memory_space<vmem>>, %arg3: memref<128x128xbf16, #tpu.memory_space<vmem>>, %arg4: memref<128x128xbf16, #tpu.memory_space<vmem>>, %arg5: memref<128x128xbf16, #tpu.memory_space<vmem>>, %arg6: memref<8x128xf32, #tpu.memory_space<vmem>>, %arg7: memref<1x128xf32, #tpu.memory_space<vmem>>, %arg8: memref<32x128xf32, #tpu.memory_space<vmem>>) attributes {dimension_semantics = [#tpu.dimension_semantics<parallel>], iteration_bounds = array<i64: 2>, scalar_prefetch = 0 : i64, scratch_operands = 0 : i64, tpu.core_type = #tpu.core_type<tc>, window_params = [{transform_indices = @transform_0, window_bounds = array<i64: 32, 64>}, {pipeline_mode = #tpu.pipeline_mode<synchronous>, transform_indices = @transform_1, window_bounds = array<i64: 64, 128>}, {pipeline_mode = #tpu.pipeline_mode<synchronous>, transform_indices = @transform_2, window_bounds = array<i64: 128, 128>}, {pipeline_mode = #tpu.pipeline_mode<synchronous>, transform_indices = @transform_3, window_bounds = array<i64: 128, 128>}, {pipeline_mode = #tpu.pipeline_mode<synchronous>, transform_indices = @transform_4, window_bounds = array<i64: 128, 128>}, {pipeline_mode = #tpu.pipeline_mode<synchronous>, transform_indices = @transform_5, window_bounds = array<i64: 8, 128>}, {pipeline_mode = #tpu.pipeline_mode<synchronous>, transform_indices = @transform_6, window_bounds = array<i64: 1, 128>}, {transform_indices = @transform_7, window_bounds = array<i64: 32, 128>}]} {
    %c0 = arith.constant 0 : index
    %c0_0 = arith.constant 0 : index
    %0 = vector.load %arg1[%c0, %c0_0] : memref<32x64xbf16, #tpu.memory_space<vmem>>, vector<32x64xbf16>
    %c0_1 = arith.constant 0 : index
    %c0_2 = arith.constant 0 : index
    %1 = vector.load %arg2[%c0_1, %c0_2] : memref<64x128xbf16, #tpu.memory_space<vmem>>, vector<64x128xbf16>
    %cst = arith.constant dense<0.000000e+00> : vector<32x128xf32>
    %2 = tpu.matmul %0, %1, %cst {dimension_numbers = #tpu.dot_dimension_numbers<[1], [0], [0], [1], [0, 0, 1, 1], [], []>} : vector<32x64xbf16>, vector<64x128xbf16>, vector<32x128xf32> -> vector<32x128xf32>
    %3 = arith.truncf %2 : vector<32x128xf32> to vector<32x128xbf16>
    %c0_3 = arith.constant 0 : index
    %c0_4 = arith.constant 0 : index
    %4 = vector.load %arg3[%c0_3, %c0_4] : memref<128x128xbf16, #tpu.memory_space<vmem>>, vector<128x128xbf16>
    %cst_5 = arith.constant dense<0.000000e+00> : vector<32x128xf32>
    %5 = tpu.matmul %3, %4, %cst_5 {dimension_numbers = #tpu.dot_dimension_numbers<[1], [0], [0], [1], [0, 0, 1, 1], [], []>} : vector<32x128xbf16>, vector<128x128xbf16>, vector<32x128xf32> -> vector<32x128xf32>
    %c0_6 = arith.constant 0 : index
    %c0_7 = arith.constant 0 : index
    %6 = vector.load %arg6[%c0_6, %c0_7] : memref<8x128xf32, #tpu.memory_space<vmem>>, vector<1x128xf32>
    %7 = vector.broadcast %6 : vector<1x128xf32> to vector<32x128xf32>
    %8 = arith.addf %5, %7 : vector<32x128xf32>
    %cst_8 = arith.constant 0.000000e+00 : f32
    %9 = vector.broadcast %cst_8 : f32 to vector<32x128xf32>
    %10 = arith.maximumf %8, %9 : vector<32x128xf32>
    %11 = arith.truncf %10 : vector<32x128xf32> to vector<32x128xbf16>
    %c0_9 = arith.constant 0 : index
    %c0_10 = arith.constant 0 : index
    %12 = vector.load %arg4[%c0_9, %c0_10] : memref<128x128xbf16, #tpu.memory_space<vmem>>, vector<128x128xbf16>
    %cst_11 = arith.constant dense<0.000000e+00> : vector<32x128xf32>
    %13 = tpu.matmul %11, %12, %cst_11 {dimension_numbers = #tpu.dot_dimension_numbers<[1], [0], [0], [1], [0, 0, 1, 1], [], []>} : vector<32x128xbf16>, vector<128x128xbf16>, vector<32x128xf32> -> vector<32x128xf32>
    %c1 = arith.constant 1 : index
    %c0_12 = arith.constant 0 : index
    %14 = vector.load %arg6[%c1, %c0_12] : memref<8x128xf32, #tpu.memory_space<vmem>>, vector<1x128xf32>
    %15 = vector.broadcast %14 : vector<1x128xf32> to vector<32x128xf32>
    %16 = arith.addf %13, %15 : vector<32x128xf32>
    %cst_13 = arith.constant 0.000000e+00 : f32
    %17 = vector.broadcast %cst_13 : f32 to vector<32x128xf32>
    %18 = arith.maximumf %16, %17 : vector<32x128xf32>
    %19 = arith.truncf %18 : vector<32x128xf32> to vector<32x128xbf16>
    %c0_14 = arith.constant 0 : index
    %c0_15 = arith.constant 0 : index
    %20 = vector.load %arg5[%c0_14, %c0_15] : memref<128x128xbf16, #tpu.memory_space<vmem>>, vector<128x128xbf16>
    %cst_16 = arith.constant dense<0.000000e+00> : vector<32x128xf32>
    %21 = tpu.matmul %19, %20, %cst_16 {dimension_numbers = #tpu.dot_dimension_numbers<[1], [0], [0], [1], [0, 0, 1, 1], [], []>} : vector<32x128xbf16>, vector<128x128xbf16>, vector<32x128xf32> -> vector<32x128xf32>
    %c0_17 = arith.constant 0 : index
    %c0_18 = arith.constant 0 : index
    %22 = vector.load %arg7[%c0_17, %c0_18] : memref<1x128xf32, #tpu.memory_space<vmem>>, vector<1x128xf32>
    %23 = vector.broadcast %22 : vector<1x128xf32> to vector<32x128xf32>
    %24 = arith.addf %21, %23 : vector<32x128xf32>
    %cst_19 = arith.constant dense<0xFF800000> : vector<32xf32>
    %25 = vector.multi_reduction <maximumf>, %24, %cst_19 [1] : vector<32x128xf32> to vector<32xf32>
    %26 = vector.shape_cast %25 : vector<32xf32> to vector<32x1xf32>
    %27 = vector.broadcast %26 : vector<32x1xf32> to vector<32x128xf32>
    %28 = arith.subf %24, %27 : vector<32x128xf32>
    %29 = math.exp %28 : vector<32x128xf32>
    %cst_20 = arith.constant dense<0.000000e+00> : vector<32xf32>
    %30 = vector.multi_reduction <add>, %29, %cst_20 [1] : vector<32x128xf32> to vector<32xf32>
    %31 = vector.shape_cast %30 : vector<32xf32> to vector<32x1xf32>
    %32 = math.log %31 : vector<32x1xf32>
    %33 = vector.broadcast %26 : vector<32x1xf32> to vector<32x128xf32>
    %34 = arith.subf %24, %33 : vector<32x128xf32>
    %35 = vector.broadcast %32 : vector<32x1xf32> to vector<32x128xf32>
    %36 = arith.subf %34, %35 : vector<32x128xf32>
    %c0_21 = arith.constant 0 : index
    %c0_22 = arith.constant 0 : index
    %37 = vector.load %arg8[%c0_21, %c0_22] : memref<32x128xf32, #tpu.memory_space<vmem>>, vector<32x128xf32>
    tpu.vector_store %arg8[%c0_21, %c0_22], %36 {strides = array<i32>} : memref<32x128xf32, #tpu.memory_space<vmem>>, vector<32x128xf32>,
    return
  }
  func.func @transform_0(%arg0: i32) -> (i32, i32) {
    %c0_i32 = arith.constant 0 : i32
    %c0_i32_0 = arith.constant 0 : i32
    return %arg0, %c0_i32 : i32, i32
  }
  func.func @transform_1(%arg0: i32) -> (i32, i32) {
    %c0_i32 = arith.constant 0 : i32
    %c0_i32_0 = arith.constant 0 : i32
    %c0_i32_1 = arith.constant 0 : i32
    return %c0_i32, %c0_i32_0 : i32, i32
  }
  func.func @transform_2(%arg0: i32) -> (i32, i32) {
    %c0_i32 = arith.constant 0 : i32
    %c0_i32_0 = arith.constant 0 : i32
    %c0_i32_1 = arith.constant 0 : i32
    return %c0_i32, %c0_i32_0 : i32, i32
  }
  func.func @transform_3(%arg0: i32) -> (i32, i32) {
    %c0_i32 = arith.constant 0 : i32
    %c0_i32_0 = arith.constant 0 : i32
    %c0_i32_1 = arith.constant 0 : i32
    return %c0_i32, %c0_i32_0 : i32, i32
  }
  func.func @transform_4(%arg0: i32) -> (i32, i32) {
    %c0_i32 = arith.constant 0 : i32
    %c0_i32_0 = arith.constant 0 : i32
    %c0_i32_1 = arith.constant 0 : i32
    return %c0_i32, %c0_i32_0 : i32, i32
  }
  func.func @transform_5(%arg0: i32) -> (i32, i32) {
    %c0_i32 = arith.constant 0 : i32
    %c0_i32_0 = arith.constant 0 : i32
    %c0_i32_1 = arith.constant 0 : i32
    return %c0_i32, %c0_i32_0 : i32, i32
  }
  func.func @transform_6(%arg0: i32) -> (i32, i32) {
    %c0_i32 = arith.constant 0 : i32
    %c0_i32_0 = arith.constant 0 : i32
    %c0_i32_1 = arith.constant 0 : i32
    return %c0_i32, %c0_i32_0 : i32, i32
  }
  func.func @transform_7(%arg0: i32) -> (i32, i32) {
    %c0_i32 = arith.constant 0 : i32
    %c0_i32_0 = arith.constant 0 : i32
    return %arg0, %c0_i32 : i32, i32
  }
}

module attributes {stable_mosaic.version = 11 : i64} {
  func.func @gin_conv1_kernel(%arg0: i32, %arg1: memref<32x64xbf16, #tpu.memory_space<vmem>>, %arg2: memref<64x16xbf16, #tpu.memory_space<vmem>>, %arg3: memref<16x128xbf16, #tpu.memory_space<vmem>>, %arg4: memref<128x128xbf16, #tpu.memory_space<vmem>>, %arg5: memref<8x128xf32, #tpu.memory_space<vmem>>, %arg6: memref<32x128xbf16, #tpu.memory_space<vmem>>) attributes {dimension_semantics = [#tpu.dimension_semantics<parallel>], iteration_bounds = array<i64: 2>, scalar_prefetch = 0 : i64, scratch_operands = 0 : i64, tpu.core_type = #tpu.core_type<tc>, window_params = [{transform_indices = @transform_0, window_bounds = array<i64: 32, 64>}, {pipeline_mode = #tpu.pipeline_mode<synchronous>, transform_indices = @transform_1, window_bounds = array<i64: 64, 16>}, {pipeline_mode = #tpu.pipeline_mode<synchronous>, transform_indices = @transform_2, window_bounds = array<i64: 16, 128>}, {pipeline_mode = #tpu.pipeline_mode<synchronous>, transform_indices = @transform_3, window_bounds = array<i64: 128, 128>}, {pipeline_mode = #tpu.pipeline_mode<synchronous>, transform_indices = @transform_4, window_bounds = array<i64: 8, 128>}, {transform_indices = @transform_5, window_bounds = array<i64: 32, 128>}]} {
    %c0 = arith.constant 0 : index
    %c0_0 = arith.constant 0 : index
    %0 = vector.load %arg1[%c0, %c0_0] : memref<32x64xbf16, #tpu.memory_space<vmem>>, vector<32x64xbf16>
    %c0_1 = arith.constant 0 : index
    %c0_2 = arith.constant 0 : index
    %1 = vector.load %arg2[%c0_1, %c0_2] : memref<64x16xbf16, #tpu.memory_space<vmem>>, vector<64x16xbf16>
    %cst = arith.constant dense<0.000000e+00> : vector<32x16xf32>
    %2 = tpu.matmul %0, %1, %cst {dimension_numbers = #tpu.dot_dimension_numbers<[1], [0], [0], [1], [0, 0, 1, 1], [], []>} : vector<32x64xbf16>, vector<64x16xbf16>, vector<32x16xf32> -> vector<32x16xf32>
    %3 = arith.truncf %2 : vector<32x16xf32> to vector<32x16xbf16>
    %c0_3 = arith.constant 0 : index
    %c0_4 = arith.constant 0 : index
    %4 = vector.load %arg3[%c0_3, %c0_4] : memref<16x128xbf16, #tpu.memory_space<vmem>>, vector<16x128xbf16>
    %cst_5 = arith.constant dense<0.000000e+00> : vector<32x128xf32>
    %5 = tpu.matmul %3, %4, %cst_5 {dimension_numbers = #tpu.dot_dimension_numbers<[1], [0], [0], [1], [0, 0, 1, 1], [], []>} : vector<32x16xbf16>, vector<16x128xbf16>, vector<32x128xf32> -> vector<32x128xf32>
    %c0_6 = arith.constant 0 : index
    %c0_7 = arith.constant 0 : index
    %6 = vector.load %arg5[%c0_6, %c0_7] : memref<8x128xf32, #tpu.memory_space<vmem>>, vector<1x128xf32>
    %7 = vector.broadcast %6 : vector<1x128xf32> to vector<32x128xf32>
    %8 = arith.addf %5, %7 : vector<32x128xf32>
    %cst_8 = arith.constant 0.000000e+00 : f32
    %9 = vector.broadcast %cst_8 : f32 to vector<32x128xf32>
    %10 = arith.maximumf %8, %9 : vector<32x128xf32>
    %11 = arith.truncf %10 : vector<32x128xf32> to vector<32x128xbf16>
    %c0_9 = arith.constant 0 : index
    %c0_10 = arith.constant 0 : index
    %12 = vector.load %arg4[%c0_9, %c0_10] : memref<128x128xbf16, #tpu.memory_space<vmem>>, vector<128x128xbf16>
    %cst_11 = arith.constant dense<0.000000e+00> : vector<32x128xf32>
    %13 = tpu.matmul %11, %12, %cst_11 {dimension_numbers = #tpu.dot_dimension_numbers<[1], [0], [0], [1], [0, 0, 1, 1], [], []>} : vector<32x128xbf16>, vector<128x128xbf16>, vector<32x128xf32> -> vector<32x128xf32>
    %c1 = arith.constant 1 : index
    %c0_12 = arith.constant 0 : index
    %14 = vector.load %arg5[%c1, %c0_12] : memref<8x128xf32, #tpu.memory_space<vmem>>, vector<1x128xf32>
    %15 = vector.broadcast %14 : vector<1x128xf32> to vector<32x128xf32>
    %16 = arith.addf %13, %15 : vector<32x128xf32>
    %cst_13 = arith.constant 0.000000e+00 : f32
    %17 = vector.broadcast %cst_13 : f32 to vector<32x128xf32>
    %18 = arith.maximumf %16, %17 : vector<32x128xf32>
    %19 = arith.truncf %18 : vector<32x128xf32> to vector<32x128xbf16>
    %c0_14 = arith.constant 0 : index
    %c0_15 = arith.constant 0 : index
    %20 = vector.load %arg6[%c0_14, %c0_15] : memref<32x128xbf16, #tpu.memory_space<vmem>>, vector<32x128xbf16>
    tpu.vector_store %arg6[%c0_14, %c0_15], %19 {strides = array<i32>} : memref<32x128xbf16, #tpu.memory_space<vmem>>, vector<32x128xbf16>,
    return
  }
  func.func @transform_0(%arg0: i32) -> (i32, i32) {
    %c0_i32 = arith.constant 0 : i32
    %c0_i32_0 = arith.constant 0 : i32
    return %arg0, %c0_i32 : i32, i32
  }
  func.func @transform_1(%arg0: i32) -> (i32, i32) {
    %c0_i32 = arith.constant 0 : i32
    %c0_i32_0 = arith.constant 0 : i32
    %c0_i32_1 = arith.constant 0 : i32
    return %c0_i32, %c0_i32_0 : i32, i32
  }
  func.func @transform_2(%arg0: i32) -> (i32, i32) {
    %c0_i32 = arith.constant 0 : i32
    %c0_i32_0 = arith.constant 0 : i32
    %c0_i32_1 = arith.constant 0 : i32
    return %c0_i32, %c0_i32_0 : i32, i32
  }
  func.func @transform_3(%arg0: i32) -> (i32, i32) {
    %c0_i32 = arith.constant 0 : i32
    %c0_i32_0 = arith.constant 0 : i32
    %c0_i32_1 = arith.constant 0 : i32
    return %c0_i32, %c0_i32_0 : i32, i32
  }
  func.func @transform_4(%arg0: i32) -> (i32, i32) {
    %c0_i32 = arith.constant 0 : i32
    %c0_i32_0 = arith.constant 0 : i32
    %c0_i32_1 = arith.constant 0 : i32
    return %c0_i32, %c0_i32_0 : i32, i32
  }
  func.func @transform_5(%arg0: i32) -> (i32, i32) {
    %c0_i32 = arith.constant 0 : i32
    %c0_i32_0 = arith.constant 0 : i32
    return %arg0, %c0_i32 : i32, i32
  }
}

</mosaic_0001>

<llo_original>
// kernel: gin_forward_padded.2
$region0: #{gin_forward_padded.2}
  #allocation0 [shape = 'u32[]', space=smem, size = 0x4, offset = 0x4, fixed_abs, tag = 'smem constant byte address 0x4 - core index']
  #allocation1 [shape = 'u32[144,128]{1,0:T(1,128)}', space=vmem, size = 0x12000, scoped, tag = 'internal scratch']
  %s0 = inlined_call_operand.vmem [shape: bf16[64,64], index: 0, kind: input, shape index: {}]
  %s1 = inlined_call_operand.vmem [shape: bf16[64,16], index: 1, kind: input, shape index: {}]
  %s2 = inlined_call_operand.vmem [shape: bf16[16,128], index: 2, kind: input, shape index: {}]
  %s3 = inlined_call_operand.hbm [shape: bf16[128,128], index: 3, kind: input, shape index: {}]
  %s4 = inlined_call_operand.hbm [shape: f32[8,128], index: 4, kind: input, shape index: {}]
  %s5 = inlined_call_operand.vmem [shape: bf16[64,128], index: 5, kind: output, shape index: {}]
  %s6 = sld [smem:[#allocation0]]
  $region61: #{gin_forward_padded.2} parent=0
    _
  %s8 = ssub.s32 1, %s6
  %s9 = scalar_select 0, %s8, %s6
  $region1: #{gin_forward_padded.2} parent=0
    #allocation2 [shape = 'u8[32768]{0}', space=vmem, size = 0x8000, scoped, tag = 'input window, operand 3, single buffered']
    #allocation3 [shape = 's32[2]{0}', space=sflag, size = 0x8, scoped, tag = 'scoped memory for gin_forward_padded.2']
    #allocation4 [shape = 'u8[4096]{0}', space=vmem, size = 0x1000, scoped, tag = 'input window, operand 4, single buffered']
    #allocation5 [shape = 's32[1]{0}', space=sflag, size = 0x4, scoped, tag = 'scoped memory for gin_forward_padded.2']
    %10 = vsyncpa [#allocation3], 0
    %11 = vsyncpa [#allocation5], 0
    loop: start=0, step=1, limit=4
    $region2: #{gin_forward_padded.2} parent=1 // loop_pre_header
      _
    $region3: #{gin_forward_padded.2} parent=1 // loop_header
      %s13 = sphi 0, %s17
      %p14 = scmp.ge.s32.totalorder %s13, 4
      %s23 = sphi 0, %s25
      %s26 = sphi 0, %s23
      %s27 = sphi 0, %s26
      %s43 = sphi 0, %s27
      %s47 = sphi 0, %s47
      %s49 = sphi 0, %s47
      %s50 = sphi 0, %s49
      %s64 = sphi 0, %s50
      %s68 = sphi 0, %s68
      %s70 = sphi 0, %s68
      %s71 = sphi 0, %s70
      %s85 = sphi 0, %s71
      %s89 = sphi 0, %s89
      %s91 = sphi 0, %s89
      %s92 = sphi 0, %s91
      %s106 = sphi 0, %s92
      %s110 = sphi 0, %s110
      %s112 = sphi 0, %s110
      %s113 = sphi 0, %s112
      %s127 = sphi 0, %s113
      %s133 = sphi 0, %s135
      %s136 = sphi 0, %s133
      %s137 = sphi 0, %s136
      %s153 = sphi 0, %s137
    $region4: #{gin_forward_padded.2} parent=1 // loop_header_branch
      %16 = sbr.rel (%p14) target = $region8
    $region5: #{gin_forward_padded.2} parent=1 // loop_body
      %s18 = ssub.s32 %s13, 1
      %s19 = ssub.s32 %s13, 2
      %s20 = sadd.s32 %s13, 1
      %s21 = ssub.s32 %s13, %s20
      %p22 = scmp.eq.s32.totalorder %s21, 0
      %s24 = sadd.s32 %s23, 1
      %s25 = scalar_select %p22, %s23, %s24
      %p28 = pneg %p22
      %p29 = scmp.eq.s32.totalorder %s13, 1
      %p30 = por %p28, %p29
      %p31 = scmp.ne.s32.totalorder %s23, %s26
      %p32 = scmp.eq.s32.totalorder %s13, 0
      %p33 = por %p31, %p32
      %p34 = scmp.ne.s32.totalorder %s23, %s26
      %p35 = scmp.eq.s32.totalorder %s18, 1
      %p36 = por %p34, %p35
      %p37 = scmp.ne.s32.totalorder %s26, %s27
      %p38 = scmp.eq.s32.totalorder %s18, 0
      %p39 = por %p37, %p38
      %p40 = scmp.ne.s32.totalorder %s26, %s27
      %p41 = scmp.eq.s32.totalorder %s19, 1
      %p42 = por %p40, %p41
      %p44 = scmp.ne.s32.totalorder %s27, %s43
      %p45 = scmp.eq.s32.totalorder %s19, 0
      %p46 = por %p44, %p45
      %s48 = sadd.s32 %s47, 1
      %p51 = scmp.eq.s32.totalorder %s13, 1
      %p52 = scmp.ne.s32.totalorder %s47, %s49
      %p53 = scmp.eq.s32.totalorder %s13, 0
      %p54 = por %p52, %p53
      %p55 = scmp.ne.s32.totalorder %s47, %s49
      %p56 = scmp.eq.s32.totalorder %s18, 1
      %p57 = por %p55, %p56
      %p58 = scmp.ne.s32.totalorder %s49, %s50
      %p59 = scmp.eq.s32.totalorder %s18, 0
      %p60 = por %p58, %p59
      %p61 = scmp.ne.s32.totalorder %s49, %s50
      %p62 = scmp.eq.s32.totalorder %s19, 1
      %p63 = por %p61, %p62
      %p65 = scmp.ne.s32.totalorder %s50, %s64
      %p66 = scmp.eq.s32.totalorder %s19, 0
      %p67 = por %p65, %p66
      %s69 = sadd.s32 %s68, 1
      %p72 = scmp.eq.s32.totalorder %s13, 1
      %p73 = scmp.ne.s32.totalorder %s68, %s70
      %p74 = scmp.eq.s32.totalorder %s13, 0
      %p75 = por %p73, %p74
      %p76 = scmp.ne.s32.totalorder %s68, %s70
      %p77 = scmp.eq.s32.totalorder %s18, 1
      %p78 = por %p76, %p77
      %p79 = scmp.ne.s32.totalorder %s70, %s71
      %p80 = scmp.eq.s32.totalorder %s18, 0
      %p81 = por %p79, %p80
      %p82 = scmp.ne.s32.totalorder %s70, %s71
      %p83 = scmp.eq.s32.totalorder %s19, 1
      %p84 = por %p82, %p83
      %p86 = scmp.ne.s32.totalorder %s71, %s85
      %p87 = scmp.eq.s32.totalorder %s19, 0
      %p88 = por %p86, %p87
      %s90 = sadd.s32 %s89, 1
      %p93 = scmp.eq.s32.totalorder %s13, 1
      %p94 = scmp.ne.s32.totalorder %s89, %s91
      %p95 = scmp.eq.s32.totalorder %s13, 0
      %p96 = por %p94, %p95
      %p97 = scmp.ne.s32.totalorder %s89, %s91
      %p98 = scmp.eq.s32.totalorder %s18, 1
      %p99 = por %p97, %p98
      %p100 = scmp.ne.s32.totalorder %s91, %s92
      %p101 = scmp.eq.s32.totalorder %s18, 0
      %p102 = por %p100, %p101
      %p103 = scmp.ne.s32.totalorder %s91, %s92
      %p104 = scmp.eq.s32.totalorder %s19, 1
      %p105 = por %p103, %p104
      %p107 = scmp.ne.s32.totalorder %s92, %s106
      %p108 = scmp.eq.s32.totalorder %s19, 0
      %p109 = por %p107, %p108
      %s111 = sadd.s32 %s110, 1
      %p114 = scmp.eq.s32.totalorder %s13, 1
      %p115 = scmp.ne.s32.totalorder %s110, %s112
      %p116 = scmp.eq.s32.totalorder %s13, 0
      %p117 = por %p115, %p116
      %p118 = scmp.ne.s32.totalorder %s110, %s112
      %p119 = scmp.eq.s32.totalorder %s18, 1
      %p120 = por %p118, %p119
      %p121 = scmp.ne.s32.totalorder %s112, %s113
      %p122 = scmp.eq.s32.totalorder %s18, 0
      %p123 = por %p121, %p122
      %p124 = scmp.ne.s32.totalorder %s112, %s113
      %p125 = scmp.eq.s32.totalorder %s19, 1
      %p126 = por %p124, %p125
      %p128 = scmp.ne.s32.totalorder %s113, %s127
      %p129 = scmp.eq.s32.totalorder %s19, 0
      %p130 = por %p128, %p129
      %s131 = ssub.s32 %s13, %s20
      %p132 = scmp.eq.s32.totalorder %s131, 0
      %s134 = sadd.s32 %s133, 1
      %s135 = scalar_select %p132, %s133, %s134
      %p138 = pneg %p132
      %p139 = scmp.eq.s32.totalorder %s13, 1
      %p140 = por %p138, %p139
      %p141 = scmp.ne.s32.totalorder %s133, %s136
      %p142 = scmp.eq.s32.totalorder %s13, 0
      %p143 = por %p141, %p142
      %p144 = scmp.ne.s32.totalorder %s133, %s136
      %p145 = scmp.eq.s32.totalorder %s18, 1
      %p146 = por %p144, %p145
      %p147 = scmp.ne.s32.totalorder %s136, %s137
      %p148 = scmp.eq.s32.totalorder %s18, 0
      %p149 = por %p147, %p148
      %p150 = scmp.ne.s32.totalorder %s136, %s137
      %p151 = scmp.eq.s32.totalorder %s19, 1
      %p152 = por %p150, %p151
      %p154 = scmp.ne.s32.totalorder %s137, %s153
      %p155 = scmp.eq.s32.totalorder %s19, 0
      %p156 = por %p154, %p155
      %p157 = scmp.le.s32.totalorder 1, %s13
      %p158 = scmp.lt.s32.totalorder %s13, 3
      %p159 = pnand %p157, %p158
      %p160 = pneg %p159
      // Predicated region
      $region9: #{gin_forward_padded.2} parent=5 // pred_check
        _
      $region10: #{gin_forward_padded.2} parent=5 // pred_check_branch
        %162 = sbr.rel (%p159) target = $region12
      $region11: #{gin_forward_padded.2} parent=5 // pred_region
        %s163 = ssub.s32 %s13, 1
        // Predicated region
        $region13: #{gin_forward_padded.2} parent=11 // pred_check
          %p164 = pneg %p60
        $region14: #{gin_forward_padded.2} parent=11 // pred_check_branch
          %166 = sbr.rel (%p164) target = $region16
        $region15: #{gin_forward_padded.2} parent=11 // pred_region
          _
        $region16: #{gin_forward_padded.2} parent=11 // pred_fallthru
          _
        // Predicated region
        $region17: #{gin_forward_padded.2} parent=11 // pred_check
          %p167 = pneg %p81
        $region18: #{gin_forward_padded.2} parent=11 // pred_check_branch
          %169 = sbr.rel (%p167) target = $region20
        $region19: #{gin_forward_padded.2} parent=11 // pred_region
          _
        $region20: #{gin_forward_padded.2} parent=11 // pred_fallthru
          _
        // Predicated region
        $region21: #{gin_forward_padded.2} parent=11 // pred_check
          %p170 = pneg %p102
        $region22: #{gin_forward_padded.2} parent=11 // pred_check_branch
          %172 = sbr.rel (%p170) target = $region24
        $region23: #{gin_forward_padded.2} parent=11 // pred_region
          %s174 = ssub.s32 1024, 1024
          %175 = vsyncadd [#allocation3], %s174
          %s176 = sshll.u32 [#allocation2], 4
          %s177 = int_to_ptr.vmem [resolvable:$true] %s176
          %182 = dma.hbm_to_vmem [thread:$0]  %s3, 1024, %s177, [#allocation3], 64, 64, 4
        $region24: #{gin_forward_padded.2} parent=11 // pred_fallthru
          _
        // Predicated region
        $region25: #{gin_forward_padded.2} parent=11 // pred_check
          %p183 = pneg %p123
        $region26: #{gin_forward_padded.2} parent=11 // pred_check_branch
          %185 = sbr.rel (%p183) target = $region28
        $region27: #{gin_forward_padded.2} parent=11 // pred_region
          %s187 = ssub.s32 128, 128
          %188 = vsyncadd [#allocation5], %s187
          %s190 = sshll.u32 [#allocation4], 4
          %s191 = int_to_ptr.vmem [resolvable:$true] %s190
          %193 = dma.hbm_to_vmem [thread:$0]  %s4, 128, %s191, [#allocation5]
        $region28: #{gin_forward_padded.2} parent=11 // pred_fallthru
          _
      $region12: #{gin_forward_padded.2} parent=5 // pred_fallthru
        _
      %p194 = scmp.lt.s32.totalorder %s13, 2
      // Predicated region
      $region29: #{gin_forward_padded.2} parent=5 // pred_check
        %p195 = pneg %p194
      $region30: #{gin_forward_padded.2} parent=5 // pred_check_branch
        %197 = sbr.rel (%p195) target = $region32
      $region31: #{gin_forward_padded.2} parent=5 // pred_region
        // Predicated region
        $region33: #{gin_forward_padded.2} parent=31 // pred_check
          %p198 = pneg %p33
        $region34: #{gin_forward_padded.2} parent=31 // pred_check_branch
          %200 = sbr.rel (%p198) target = $region36
        $region35: #{gin_forward_padded.2} parent=31 // pred_region
          %s201 = smul.u32 4, %s13
          %p202 = scmp.lt.s32.totalorder %s201, 7
          %s203 = scalar_select %p202, %s201, 7
          %s204 = smul.addr %s203, 4
          %s205 = scalar_lea.vmem %s0, %s204
          %s206 = smul.u32 4, %s13
        $region36: #{gin_forward_padded.2} parent=31 // pred_fallthru
          _
      $region32: #{gin_forward_padded.2} parent=5 // pred_fallthru
        _
      %p207 = scmp.le.s32.totalorder 1, %s13
      %p208 = scmp.lt.s32.totalorder %s13, 3
      %p209 = pnand %p207, %p208
      %p210 = pneg %p209
      // Predicated region
      $region37: #{gin_forward_padded.2} parent=5 // pred_check
        _
      $region38: #{gin_forward_padded.2} parent=5 // pred_check_branch
        %212 = sbr.rel (%p209) target = $region40
      $region39: #{gin_forward_padded.2} parent=5 // pred_region
        %s213 = ssub.s32 %s13, 1
        // Predicated region
        $region41: #{gin_forward_padded.2} parent=39 // pred_check
          %p214 = pneg %p102
        $region42: #{gin_forward_padded.2} parent=39 // pred_check_branch
          %216 = sbr.rel (%p214) target = $region44
        $region43: #{gin_forward_padded.2} parent=39 // pred_region
          %217 = dma.done [#allocation3], 1024
        $region44: #{gin_forward_padded.2} parent=39 // pred_fallthru
          _
        // Predicated region
        $region45: #{gin_forward_padded.2} parent=39 // pred_check
          %p218 = pneg %p123
        $region46: #{gin_forward_padded.2} parent=39 // pred_check_branch
          %220 = sbr.rel (%p218) target = $region48
        $region47: #{gin_forward_padded.2} parent=39 // pred_region
          %221 = dma.done [#allocation5], 128
        $region48: #{gin_forward_padded.2} parent=39 // pred_fallthru
          _
        %s222 = smul.u32 4, %s18
        %p223 = scmp.lt.s32.totalorder %s222, 7
        %s224 = scalar_select %p223, %s222, 7
        %s225 = smul.addr %s224, 4
        %s226 = scalar_lea.vmem %s0, %s225
        %p227 = pneg %p39
        %p228 = pneg %p36
        %p229 = pneg %p60
        %p230 = pneg %p57
        %p231 = pneg %p81
        %p232 = pneg %p78
        %p233 = pneg %p102
        %p234 = pneg %p99
        %p235 = pneg %p123
        %p236 = pneg %p120
        %p237 = pneg %p149
        %p238 = pneg %p146
        %s239 = smul.u32 4, %s18
        %p240 = scmp.lt.s32.totalorder %s239, 7
        %s241 = scalar_select %p240, %s239, 7
        %s242 = smul.addr %s241, 4
        %s243 = scalar_lea.vmem %s5, %s242
        %s244 = smul.u32 4, %s18
        %p245 = scmp.lt.s32.totalorder %s244, 7
        %s246 = scalar_select %p245, %s244, 7
        %s247 = smul.addr %s246, 4
        %s248 = scalar_lea.vmem %s0, %s247
        %s249 = smul.u32 4, %s18
        %s250 = smul.u32 4, %s18
        %p251 = scmp.lt.s32.totalorder %s250, 7
        %s252 = scalar_select %p251, %s250, 7
        %s253 = smul.addr %s252, 4
        %s254 = scalar_lea.vmem %s5, %s253
        %s255 = smul.u32 4, %s18
        %v257 = vld [vmem:[%s248] sm:$0xf]
        %v258 = vld [vmem:[%s248 + $0x4] sm:$0xf]
        %v259 = vld [vmem:[%s248 + $0x8] sm:$0xf]
        %v260 = vld [vmem:[%s248 + $0xc] sm:$0xf]
        %v261 = vld [vmem:[%s1] sm:$0xf]
        %v262 = vld [vmem:[%s1 + $0x4] sm:$0xf]
        %v263 = vld [vmem:[%s1 + $0x8] sm:$0xf]
        %v264 = vld [vmem:[%s1 + $0xc] sm:$0xf]
        %v265 = vld [vmem:[%s1 + $0x10] sm:$0xf]
        %v266 = vld [vmem:[%s1 + $0x14] sm:$0xf]
        %v267 = vld [vmem:[%s1 + $0x18] sm:$0xf]
        %v268 = vld [vmem:[%s1 + $0x1c] sm:$0xf]
        %v273 = vunpack.c.l.b16 %v257
        %v274 = vunpack.c.l.b16 %v258
        %v275 = vunpack.c.l.b16 %v259
        %v276 = vunpack.c.l.b16 %v260
        %v277 = vpack.c.b16 %v274, %v273
        %v278 = vpack.c.b16 %v276, %v275
        %v287 = vunpack.c.l.b16 %v261
        %v288 = vunpack.c.l.b16 %v262
        %v289 = vunpack.c.l.b16 %v263
        %v290 = vunpack.c.l.b16 %v264
        %v291 = vunpack.c.l.b16 %v265
        %v292 = vunpack.c.l.b16 %v266
        %v293 = vunpack.c.l.b16 %v267
        %v294 = vunpack.c.l.b16 %v268
        %v295 = vpack.c.b16 %v288, %v287
        %v296 = vpack.c.b16 %v290, %v289
        %v297 = vpack.c.b16 %v292, %v291
        %v298 = vpack.c.b16 %v294, %v293
        %vm303 = vcmask 523264
        %v305 = vsel %vm303, %v277, 0
        %v308 = vsel %vm303, %v278, 0
        %310 = vmatprep.subr.bf16.mxu0 0
        %311 = vmatpush1.bf16.msra.mxu0 0
        %312 = vmatprep.subr.bf16.mxu0 0
        %313 = vmatpush1.bf16.msra.mxu0 0
        %314 = vmatprep.subr.bf16.mxu0 0
        %315 = vmatpush1.bf16.msra.mxu0 0
        %316 = vmatprep.subr.bf16.mxu0 0
        %317 = vmatpush1.bf16.msra.mxu0 0
        %318 = vmatprep.subr.bf16.mxu0 0
        %319 = vmatpush1.bf16.msra.mxu0 %v298
        %320 = vmatprep.subr.bf16.mxu0 0
        %321 = vmatpush1.bf16.msra.mxu0 %v297
        %322 = vmatprep.subr.bf16.mxu0 0
        %323 = vmatpush1.bf16.msra.mxu0 %v296
        %324 = vmatprep.subr.bf16.mxu0 0
        %325 = vmatpush1.bf16.msra.mxu0 %v295
        %326 = vmatprep.subr.bf16.mxu0 0
        %327 = vmatpush2.bf16.msra.mxu0 0
        %328 = vmatprep.subr.bf16.mxu0 0
        %329 = vmatpush2.bf16.msra.mxu0 0
        %330 = vmatprep.subr.bf16.mxu0 0
        %331 = vmatpush2.bf16.msra.mxu0 0
        %332 = vmatprep.subr.bf16.mxu0 0
        %333 = vmatpush2.bf16.msra.mxu0 0
        %334 = vmatprep.subr.bf16.mxu0 0
        %335 = vmatpush2.bf16.msra.mxu0 0
        %336 = vmatprep.subr.bf16.mxu0 0
        %337 = vmatpush2.bf16.msra.mxu0 0
        %338 = vmatprep.subr.bf16.mxu0 0
        %339 = vmatpush2.bf16.msra.mxu0 0
        %340 = vmatprep.subr.bf16.mxu0 0
        %341 = vmatpush2.bf16.msra.mxu0 0
        %342 = vmatprep.mubr.bf16.mxu0 0
        %343 = vmatmul.mubr.bf16.gmra.mxu0 %v305
        %v344 = vpop.f32.mrf.mxu0
        %v345 = vadd.f32 0.0, %v344
        %v346 = vpop.f32.mrf.mxu0
        %v347 = vpop.f32.mrf.mxu0
        %v348 = vadd.f32 0.0, %v347
        %v349 = vpop.f32.mrf.mxu0
        %350 = vmatprep.mubr.bf16.mxu0 0
        %351 = vmatmul.mubr.bf16.gmra.mxu0 %v308
        %v352 = vpop.f32.mrf.mxu0
        %v353 = vadd.f32 0.0, %v352
        %v354 = vpop.f32.mrf.mxu0
        %v355 = vpop.f32.mrf.mxu0
        %v356 = vadd.f32 0.0, %v355
        %v357 = vpop.f32.mrf.mxu0
        %358 = vdwg.mxu0
        %v359 = vpack.c.bf16 %v348, %v345
        %v360 = vpack.c.bf16 %v356, %v353
        %v361 = vld [vmem:[%s2] sm:$0xf]
        %v362 = vld [vmem:[%s2 + $0x4] sm:$0xf]
        %v363 = vld [vmem:[#allocation4] sm:$0x1]
        %v364 = vlaneseq
        %v365 = vshrl.u32 %v364, 7
        %v366 = vsub.s32 0, %v365
        %v367 = vrot.slane %v363, %v366
        %v370 = vunpack.c.l.b16 %v361
        %v371 = vunpack.c.l.b16 %v362
        %v372 = vpack.c.b16 %v371, %v370
        %vm374 = vcmask 130048
        %v376 = vsel %vm374, %v359, 0
        %v379 = vsel %vm374, %v360, 0
        %381 = vmatprep.subr.bf16.mxu0 0
        %382 = vmatpush1.bf16.msra.mxu0 0
        %383 = vmatprep.subr.bf16.mxu0 0
        %384 = vmatpush1.bf16.msra.mxu0 0
        %385 = vmatprep.subr.bf16.mxu0 0
        %386 = vmatpush1.bf16.msra.mxu0 0
        %387 = vmatprep.subr.bf16.mxu0 0
        %388 = vmatpush1.bf16.msra.mxu0 0
        %389 = vmatprep.subr.bf16.mxu0 0
        %390 = vmatpush1.bf16.msra.mxu0 0
        %391 = vmatprep.subr.bf16.mxu0 0
        %392 = vmatpush1.bf16.msra.mxu0 0
        %393 = vmatprep.subr.bf16.mxu0 0
        %394 = vmatpush1.bf16.msra.mxu0 0
        %395 = vmatprep.subr.bf16.mxu0 0
        %396 = vmatpush1.bf16.msra.mxu0 %v372
        %397 = vmatprep.subr.bf16.mxu0 0
        %398 = vmatpush2.bf16.msra.mxu0 0
        %399 = vmatprep.subr.bf16.mxu0 0
        %400 = vmatpush2.bf16.msra.mxu0 0
        %401 = vmatprep.subr.bf16.mxu0 0
        %402 = vmatpush2.bf16.msra.mxu0 0
        %403 = vmatprep.subr.bf16.mxu0 0
        %404 = vmatpush2.bf16.msra.mxu0 0
        %405 = vmatprep.subr.bf16.mxu0 0
        %406 = vmatpush2.bf16.msra.mxu0 0
        %407 = vmatprep.subr.bf16.mxu0 0
        %408 = vmatpush2.bf16.msra.mxu0 0
        %409 = vmatprep.subr.bf16.mxu0 0
        %410 = vmatpush2.bf16.msra.mxu0 0
        %411 = vmatprep.subr.bf16.mxu0 0
        %412 = vmatpush2.bf16.msra.mxu0 0
        %413 = vmatprep.mubr.bf16.mxu0 0
        %414 = vmatmul.mubr.bf16.gmra.mxu0 %v376
        %v415 = vpop.f32.mrf.mxu0
        %v416 = vadd.f32 %v367, %v415
        %v417 = vpop.f32.mrf.mxu0
        %v418 = vpop.f32.mrf.mxu0
        %v419 = vadd.f32 %v367, %v418
        %v420 = vpop.f32.mrf.mxu0
        %421 = vmatprep.mubr.bf16.mxu0 0
        %422 = vmatmul.mubr.bf16.gmra.mxu0 %v379
        %v423 = vpop.f32.mrf.mxu0
        %v424 = vadd.f32 %v367, %v423
        %v425 = vpop.f32.mrf.mxu0
        %v426 = vpop.f32.mrf.mxu0
        %v427 = vadd.f32 %v367, %v426
        %v428 = vpop.f32.mrf.mxu0
        %429 = vdwg.mxu0
        %v430 = vmax.f32 %v416, 0.0
        %v431 = vmax.f32 %v419, 0.0
        %v432 = vmax.f32 %v424, 0.0
        %v433 = vmax.f32 %v427, 0.0
        %v434 = vpack.c.bf16 %v431, %v430
        %v435 = vpack.c.bf16 %v433, %v432
        %v436 = vld [vmem:[#allocation2] sm:$0xf]
        %v437 = vld [vmem:[#allocation2 + $0x4] sm:$0xf]
        %v438 = vld [vmem:[#allocation2 + $0x8] sm:$0xf]
        %v439 = vld [vmem:[#allocation2 + $0xc] sm:$0xf]
        %v440 = vld [vmem:[#allocation2 + $0x10] sm:$0xf]
        %v441 = vld [vmem:[#allocation2 + $0x14] sm:$0xf]
        %v442 = vld [vmem:[#allocation2 + $0x18] sm:$0xf]
        %v443 = vld [vmem:[#allocation2 + $0x1c] sm:$0xf]
        %v444 = vld [vmem:[#allocation2 + $0x20] sm:$0xf]
        %v445 = vld [vmem:[#allocation2 + $0x24] sm:$0xf]
        %v446 = vld [vmem:[#allocation2 + $0x28] sm:$0xf]
        %v447 = vld [vmem:[#allocation2 + $0x2c] sm:$0xf]
        %v448 = vld [vmem:[#allocation2 + $0x30] sm:$0xf]
        %v449 = vld [vmem:[#allocation2 + $0x34] sm:$0xf]
        %v450 = vld [vmem:[#allocation2 + $0x38] sm:$0xf]
        %v451 = vld [vmem:[#allocation2 + $0x3c] sm:$0xf]
        %v452 = vld [vmem:[#allocation4 + $0x1] sm:$0x1]
        %v453 = vlaneseq
        %v454 = vshrl.u32 %v453, 7
        %v455 = vsub.s32 0, %v454
        %v456 = vrot.slane %v452, %v455
        %v473 = vunpack.c.l.b16 %v436
        %v474 = vunpack.c.l.b16 %v437
        %v475 = vunpack.c.l.b16 %v438
        %v476 = vunpack.c.l.b16 %v439
        %v477 = vunpack.c.l.b16 %v440
        %v478 = vunpack.c.l.b16 %v441
        %v479 = vunpack.c.l.b16 %v442
        %v480 = vunpack.c.l.b16 %v443
        %v481 = vunpack.c.l.b16 %v444
        %v482 = vunpack.c.l.b16 %v445
        %v483 = vunpack.c.l.b16 %v446
        %v484 = vunpack.c.l.b16 %v447
        %v485 = vunpack.c.l.b16 %v448
        %v486 = vunpack.c.l.b16 %v449
        %v487 = vunpack.c.l.b16 %v450
        %v488 = vunpack.c.l.b16 %v451
        %v489 = vpack.c.b16 %v474, %v473
        %v490 = vpack.c.b16 %v476, %v475
        %v491 = vpack.c.b16 %v478, %v477
        %v492 = vpack.c.b16 %v480, %v479
        %v493 = vpack.c.b16 %v482, %v481
        %v494 = vpack.c.b16 %v484, %v483
        %v495 = vpack.c.b16 %v486, %v485
        %v496 = vpack.c.b16 %v488, %v487
        %505 = vmatprep.subr.bf16.mxu0 0
        %506 = vmatpush1.bf16.msra.mxu0 %v496
        %507 = vmatprep.subr.bf16.mxu0 0
        %508 = vmatpush1.bf16.msra.mxu0 %v495
        %509 = vmatprep.subr.bf16.mxu0 0
        %510 = vmatpush1.bf16.msra.mxu0 %v494
        %511 = vmatprep.subr.bf16.mxu0 0
        %512 = vmatpush1.bf16.msra.mxu0 %v493
        %513 = vmatprep.subr.bf16.mxu0 0
        %514 = vmatpush1.bf16.msra.mxu0 %v492
        %515 = vmatprep.subr.bf16.mxu0 0
        %516 = vmatpush1.bf16.msra.mxu0 %v491
        %517 = vmatprep.subr.bf16.mxu0 0
        %518 = vmatpush1.bf16.msra.mxu0 %v490
        %519 = vmatprep.subr.bf16.mxu0 0
        %520 = vmatpush1.bf16.msra.mxu0 %v489
        %521 = vmatprep.subr.bf16.mxu0 0
        %522 = vmatpush2.bf16.msra.mxu0 0
        %523 = vmatprep.subr.bf16.mxu0 0
        %524 = vmatpush2.bf16.msra.mxu0 0
        %525 = vmatprep.subr.bf16.mxu0 0
        %526 = vmatpush2.bf16.msra.mxu0 0
        %527 = vmatprep.subr.bf16.mxu0 0
        %528 = vmatpush2.bf16.msra.mxu0 0
        %529 = vmatprep.subr.bf16.mxu0 0
        %530 = vmatpush2.bf16.msra.mxu0 0
        %531 = vmatprep.subr.bf16.mxu0 0
        %532 = vmatpush2.bf16.msra.mxu0 0
        %533 = vmatprep.subr.bf16.mxu0 0
        %534 = vmatpush2.bf16.msra.mxu0 0
        %535 = vmatprep.subr.bf16.mxu0 0
        %536 = vmatpush2.bf16.msra.mxu0 0
        %537 = vmatprep.mubr.bf16.mxu0 0
        %538 = vmatmul.mubr.bf16.gmra.mxu0 %v434
        %v539 = vpop.f32.mrf.mxu0
        %v540 = vadd.f32 %v456, %v539
        %v541 = vpop.f32.mrf.mxu0
        %v542 = vpop.f32.mrf.mxu0
        %v543 = vadd.f32 %v456, %v542
        %v544 = vpop.f32.mrf.mxu0
        %545 = vmatprep.mubr.bf16.mxu0 0
        %546 = vmatmul.mubr.bf16.gmra.mxu0 %v435
        %v547 = vpop.f32.mrf.mxu0
        %v548 = vadd.f32 %v456, %v547
        %v549 = vpop.f32.mrf.mxu0
        %v550 = vpop.f32.mrf.mxu0
        %v551 = vadd.f32 %v456, %v550
        %v552 = vpop.f32.mrf.mxu0
        %553 = vdwg.mxu0
        %v554 = vmax.f32 %v540, 0.0
        %v555 = vmax.f32 %v543, 0.0
        %v556 = vmax.f32 %v548, 0.0
        %v557 = vmax.f32 %v551, 0.0
        %v558 = vpack.c.bf16 %v555, %v554
        %v559 = vpack.c.bf16 %v557, %v556
        %v562 = vunpack.c.l.b16 %v558
        %v563 = vunpack.c.h.b16 %v558
        %v564 = vunpack.c.l.b16 %v559
        %v565 = vunpack.c.h.b16 %v559
        %v566 = vpack.c.b16 %v562, %v562
        %v567 = vpack.c.b16 %v563, %v563
        %v568 = vpack.c.b16 %v564, %v564
        %v569 = vpack.c.b16 %v565, %v565
        %574 = vst [vmem:[%s254] sm:$0xf] %v566
        %575 = vst [vmem:[%s254 + $0x4] sm:$0xf] %v567
        %576 = vst [vmem:[%s254 + $0x8] sm:$0xf] %v568
        %577 = vst [vmem:[%s254 + $0xc] sm:$0xf] %v569
        %s578 = smul.u32 4, %s18
        %p579 = scmp.lt.s32.totalorder %s578, 7
        %s580 = scalar_select %p579, %s578, 7
        %s581 = smul.addr %s580, 4
        %s582 = scalar_lea.vmem %s5, %s581
        // Predicated region
        $region49: #{gin_forward_padded.2} parent=39 // pred_check
          %p583 = pneg %p146
        $region50: #{gin_forward_padded.2} parent=39 // pred_check_branch
          %585 = sbr.rel (%p583) target = $region52
        $region51: #{gin_forward_padded.2} parent=39 // pred_region
          %s586 = smul.u32 4, %s18
        $region52: #{gin_forward_padded.2} parent=39 // pred_fallthru
          _
      $region40: #{gin_forward_padded.2} parent=5 // pred_fallthru
        _
      %p587 = scmp.le.s32.totalorder 2, %s13
      // Predicated region
      $region53: #{gin_forward_padded.2} parent=5 // pred_check
        %p588 = pneg %p587
      $region54: #{gin_forward_padded.2} parent=5 // pred_check_branch
        %590 = sbr.rel (%p588) target = $region56
      $region55: #{gin_forward_padded.2} parent=5 // pred_region
        %s591 = ssub.s32 %s13, 2
        // Predicated region
        $region57: #{gin_forward_padded.2} parent=55 // pred_check
          %p592 = pneg %p152
        $region58: #{gin_forward_padded.2} parent=55 // pred_check_branch
          %594 = sbr.rel (%p592) target = $region60
        $region59: #{gin_forward_padded.2} parent=55 // pred_region
          %s595 = smul.u32 4, %s19
          %p596 = scmp.lt.s32.totalorder %s595, 7
          %s597 = scalar_select %p596, %s595, 7
          %s598 = smul.addr %s597, 4
          %s599 = scalar_lea.vmem %s5, %s598
        $region60: #{gin_forward_padded.2} parent=55 // pred_fallthru
          _
      $region56: #{gin_forward_padded.2} parent=5 // pred_fallthru
        _
    $region6: #{gin_forward_padded.2} parent=1 // loop_footer
      %s17 = sadd.s32 1, %s13
    $region7: #{gin_forward_padded.2} parent=1 // loop_footer_branch
      %12 = sbr.rel target = $region3
    $region8: #{gin_forward_padded.2} parent=1 // loop_exit
      _
    %600 = vsyncpa [#allocation3], 1
    %s601 = scalar_lea.sflag [#allocation3], 1
    %602 = vsyncpa %s601, 1
    %603 = vsyncpa [#allocation5], 1

// kernel: gin_forward_padded.3
$region0: #{gin_forward_padded.3}
  #allocation0 [shape = 'u32[]', space=smem, size = 0x4, offset = 0x4, fixed_abs, tag = 'smem constant byte address 0x4 - core index']
  #allocation1 [shape = 'u32[144,128]{1,0:T(1,128)}', space=vmem, size = 0x12000, scoped, tag = 'internal scratch']
  %s0 = inlined_call_operand.vmem [shape: bf16[64,64], index: 0, kind: input, shape index: {}]
  %s1 = inlined_call_operand.vmem [shape: bf16[64,128], index: 1, kind: input, shape index: {}]
  %s2 = inlined_call_operand.vmem [shape: bf16[128,128], index: 2, kind: input, shape index: {}]
  %s3 = inlined_call_operand.vmem [shape: bf16[128,128], index: 3, kind: input, shape index: {}]
  %s4 = inlined_call_operand.vmem [shape: bf16[128,128], index: 4, kind: input, shape index: {}]
  %s5 = inlined_call_operand.hbm [shape: f32[8,128], index: 5, kind: input, shape index: {}]
  %s6 = inlined_call_operand.hbm [shape: f32[1,128], index: 6, kind: input, shape index: {}]
  %s7 = inlined_call_operand.hbm [shape: f32[64,128], index: 7, kind: output, shape index: {}]
  %s8 = sld [smem:[#allocation0]]
  $region69: #{gin_forward_padded.3} parent=0
    _
  %s10 = ssub.s32 1, %s8
  %s11 = scalar_select 0, %s10, %s8
  $region1: #{gin_forward_padded.3} parent=0
    #allocation2 [shape = 'u8[4096]{0}', space=vmem, size = 0x1000, scoped, tag = 'input window, operand 5, single buffered']
    #allocation3 [shape = 's32[2]{0}', space=sflag, size = 0x8, scoped, tag = 'scoped memory for gin_forward_padded.3']
    #allocation4 [shape = 's32[2]{0}', space=sflag, size = 0x8, scoped, tag = 'scoped memory for gin_forward_padded.3']
    #allocation5 [shape = 'u8[512]{0}', space=vmem, size = 0x400, scoped, tag = 'input window, operand 6, single buffered']
    #allocation6 [shape = 's32[1]{0}', space=sflag, size = 0x4, scoped, tag = 'scoped memory for gin_forward_padded.3']
    #allocation7 [shape = 'u8[32768]{0}', space=vmem, size = 0x8000, scoped, tag = 'output window, operand 0']
    %12 = vsyncpa [#allocation3], 0
    %13 = vsyncpa [#allocation6], 0
    %14 = vsyncpa [#allocation4], 0
    %s15 = scalar_lea.sflag [#allocation4], 1
    %16 = vsyncpa %s15, 0
    loop: start=0, step=1, limit=4
    $region2: #{gin_forward_padded.3} parent=1 // loop_pre_header
      _
    $region3: #{gin_forward_padded.3} parent=1 // loop_header
      %s18 = sphi 0, %s22
      %p19 = scmp.ge.s32.totalorder %s18, 4
      %s28 = sphi 0, %s30
      %s31 = sphi 0, %s28
      %s32 = sphi 0, %s31
      %s48 = sphi 0, %s32
      %s52 = sphi 0, %s52
      %s54 = sphi 0, %s52
      %s55 = sphi 0, %s54
      %s69 = sphi 0, %s55
      %s73 = sphi 0, %s73
      %s75 = sphi 0, %s73
      %s76 = sphi 0, %s75
      %s90 = sphi 0, %s76
      %s94 = sphi 0, %s94
      %s96 = sphi 0, %s94
      %s97 = sphi 0, %s96
      %s111 = sphi 0, %s97
      %s115 = sphi 0, %s115
      %s117 = sphi 0, %s115
      %s118 = sphi 0, %s117
      %s132 = sphi 0, %s118
      %s136 = sphi 0, %s136
      %s138 = sphi 0, %s136
      %s139 = sphi 0, %s138
      %s153 = sphi 0, %s139
      %s157 = sphi 0, %s157
      %s159 = sphi 0, %s157
      %s160 = sphi 0, %s159
      %s174 = sphi 0, %s160
      %s180 = sphi 0, %s182
      %s183 = sphi 0, %s180
      %s184 = sphi 0, %s183
      %s200 = sphi 0, %s184
    $region4: #{gin_forward_padded.3} parent=1 // loop_header_branch
      %21 = sbr.rel (%p19) target = $region8
    $region5: #{gin_forward_padded.3} parent=1 // loop_body
      %s23 = ssub.s32 %s18, 1
      %s24 = ssub.s32 %s18, 2
      %s25 = sadd.s32 %s18, 1
      %s26 = ssub.s32 %s18, %s25
      %p27 = scmp.eq.s32.totalorder %s26, 0
      %s29 = sadd.s32 %s28, 1
      %s30 = scalar_select %p27, %s28, %s29
      %p33 = pneg %p27
      %p34 = scmp.eq.s32.totalorder %s18, 1
      %p35 = por %p33, %p34
      %p36 = scmp.ne.s32.totalorder %s28, %s31
      %p37 = scmp.eq.s32.totalorder %s18, 0
      %p38 = por %p36, %p37
      %p39 = scmp.ne.s32.totalorder %s28, %s31
      %p40 = scmp.eq.s32.totalorder %s23, 1
      %p41 = por %p39, %p40
      %p42 = scmp.ne.s32.totalorder %s31, %s32
      %p43 = scmp.eq.s32.totalorder %s23, 0
      %p44 = por %p42, %p43
      %p45 = scmp.ne.s32.totalorder %s31, %s32
      %p46 = scmp.eq.s32.totalorder %s24, 1
      %p47 = por %p45, %p46
      %p49 = scmp.ne.s32.totalorder %s32, %s48
      %p50 = scmp.eq.s32.totalorder %s24, 0
      %p51 = por %p49, %p50
      %s53 = sadd.s32 %s52, 1
      %p56 = scmp.eq.s32.totalorder %s18, 1
      %p57 = scmp.ne.s32.totalorder %s52, %s54
      %p58 = scmp.eq.s32.totalorder %s18, 0
      %p59 = por %p57, %p58
      %p60 = scmp.ne.s32.totalorder %s52, %s54
      %p61 = scmp.eq.s32.totalorder %s23, 1
      %p62 = por %p60, %p61
      %p63 = scmp.ne.s32.totalorder %s54, %s55
      %p64 = scmp.eq.s32.totalorder %s23, 0
      %p65 = por %p63, %p64
      %p66 = scmp.ne.s32.totalorder %s54, %s55
      %p67 = scmp.eq.s32.totalorder %s24, 1
      %p68 = por %p66, %p67
      %p70 = scmp.ne.s32.totalorder %s55, %s69
      %p71 = scmp.eq.s32.totalorder %s24, 0
      %p72 = por %p70, %p71
      %s74 = sadd.s32 %s73, 1
      %p77 = scmp.eq.s32.totalorder %s18, 1
      %p78 = scmp.ne.s32.totalorder %s73, %s75
      %p79 = scmp.eq.s32.totalorder %s18, 0
      %p80 = por %p78, %p79
      %p81 = scmp.ne.s32.totalorder %s73, %s75
      %p82 = scmp.eq.s32.totalorder %s23, 1
      %p83 = por %p81, %p82
      %p84 = scmp.ne.s32.totalorder %s75, %s76
      %p85 = scmp.eq.s32.totalorder %s23, 0
      %p86 = por %p84, %p85
      %p87 = scmp.ne.s32.totalorder %s75, %s76
      %p88 = scmp.eq.s32.totalorder %s24, 1
      %p89 = por %p87, %p88
      %p91 = scmp.ne.s32.totalorder %s76, %s90
      %p92 = scmp.eq.s32.totalorder %s24, 0
      %p93 = por %p91, %p92
      %s95 = sadd.s32 %s94, 1
      %p98 = scmp.eq.s32.totalorder %s18, 1
      %p99 = scmp.ne.s32.totalorder %s94, %s96
      %p100 = scmp.eq.s32.totalorder %s18, 0
      %p101 = por %p99, %p100
      %p102 = scmp.ne.s32.totalorder %s94, %s96
      %p103 = scmp.eq.s32.totalorder %s23, 1
      %p104 = por %p102, %p103
      %p105 = scmp.ne.s32.totalorder %s96, %s97
      %p106 = scmp.eq.s32.totalorder %s23, 0
      %p107 = por %p105, %p106
      %p108 = scmp.ne.s32.totalorder %s96, %s97
      %p109 = scmp.eq.s32.totalorder %s24, 1
      %p110 = por %p108, %p109
      %p112 = scmp.ne.s32.totalorder %s97, %s111
      %p113 = scmp.eq.s32.totalorder %s24, 0
      %p114 = por %p112, %p113
      %s116 = sadd.s32 %s115, 1
      %p119 = scmp.eq.s32.totalorder %s18, 1
      %p120 = scmp.ne.s32.totalorder %s115, %s117
      %p121 = scmp.eq.s32.totalorder %s18, 0
      %p122 = por %p120, %p121
      %p123 = scmp.ne.s32.totalorder %s115, %s117
      %p124 = scmp.eq.s32.totalorder %s23, 1
      %p125 = por %p123, %p124
      %p126 = scmp.ne.s32.totalorder %s117, %s118
      %p127 = scmp.eq.s32.totalorder %s23, 0
      %p128 = por %p126, %p127
      %p129 = scmp.ne.s32.totalorder %s117, %s118
      %p130 = scmp.eq.s32.totalorder %s24, 1
      %p131 = por %p129, %p130
      %p133 = scmp.ne.s32.totalorder %s118, %s132
      %p134 = scmp.eq.s32.totalorder %s24, 0
      %p135 = por %p133, %p134
      %s137 = sadd.s32 %s136, 1
      %p140 = scmp.eq.s32.totalorder %s18, 1
      %p141 = scmp.ne.s32.totalorder %s136, %s138
      %p142 = scmp.eq.s32.totalorder %s18, 0
      %p143 = por %p141, %p142
      %p144 = scmp.ne.s32.totalorder %s136, %s138
      %p145 = scmp.eq.s32.totalorder %s23, 1
      %p146 = por %p144, %p145
      %p147 = scmp.ne.s32.totalorder %s138, %s139
      %p148 = scmp.eq.s32.totalorder %s23, 0
      %p149 = por %p147, %p148
      %p150 = scmp.ne.s32.totalorder %s138, %s139
      %p151 = scmp.eq.s32.totalorder %s24, 1
      %p152 = por %p150, %p151
      %p154 = scmp.ne.s32.totalorder %s139, %s153
      %p155 = scmp.eq.s32.totalorder %s24, 0
      %p156 = por %p154, %p155
      %s158 = sadd.s32 %s157, 1
      %p161 = scmp.eq.s32.totalorder %s18, 1
      %p162 = scmp.ne.s32.totalorder %s157, %s159
      %p163 = scmp.eq.s32.totalorder %s18, 0
      %p164 = por %p162, %p163
      %p165 = scmp.ne.s32.totalorder %s157, %s159
      %p166 = scmp.eq.s32.totalorder %s23, 1
      %p167 = por %p165, %p166
      %p168 = scmp.ne.s32.totalorder %s159, %s160
      %p169 = scmp.eq.s32.totalorder %s23, 0
      %p170 = por %p168, %p169
      %p171 = scmp.ne.s32.totalorder %s159, %s160
      %p172 = scmp.eq.s32.totalorder %s24, 1
      %p173 = por %p171, %p172
      %p175 = scmp.ne.s32.totalorder %s160, %s174
      %p176 = scmp.eq.s32.totalorder %s24, 0
      %p177 = por %p175, %p176
      %s178 = ssub.s32 %s18, %s25
      %p179 = scmp.eq.s32.totalorder %s178, 0
      %s181 = sadd.s32 %s180, 1
      %s182 = scalar_select %p179, %s180, %s181
      %p185 = pneg %p179
      %p186 = scmp.eq.s32.totalorder %s18, 1
      %p187 = por %p185, %p186
      %p188 = scmp.ne.s32.totalorder %s180, %s183
      %p189 = scmp.eq.s32.totalorder %s18, 0
      %p190 = por %p188, %p189
      %p191 = scmp.ne.s32.totalorder %s180, %s183
      %p192 = scmp.eq.s32.totalorder %s23, 1
      %p193 = por %p191, %p192
      %p194 = scmp.ne.s32.totalorder %s183, %s184
      %p195 = scmp.eq.s32.totalorder %s23, 0
      %p196 = por %p194, %p195
      %p197 = scmp.ne.s32.totalorder %s183, %s184
      %p198 = scmp.eq.s32.totalorder %s24, 1
      %p199 = por %p197, %p198
      %p201 = scmp.ne.s32.totalorder %s184, %s200
      %p202 = scmp.eq.s32.totalorder %s24, 0
      %p203 = por %p201, %p202
      %p204 = scmp.le.s32.totalorder 1, %s18
      %p205 = scmp.lt.s32.totalorder %s18, 3
      %p206 = pnand %p204, %p205
      %p207 = pneg %p206
      // Predicated region
      $region9: #{gin_forward_padded.3} parent=5 // pred_check
        _
      $region10: #{gin_forward_padded.3} parent=5 // pred_check_branch
        %209 = sbr.rel (%p206) target = $region12
      $region11: #{gin_forward_padded.3} parent=5 // pred_region
        %s210 = ssub.s32 %s18, 1
        // Predicated region
        $region13: #{gin_forward_padded.3} parent=11 // pred_check
          %p211 = pneg %p65
        $region14: #{gin_forward_padded.3} parent=11 // pred_check_branch
          %213 = sbr.rel (%p211) target = $region16
        $region15: #{gin_forward_padded.3} parent=11 // pred_region
          _
        $region16: #{gin_forward_padded.3} parent=11 // pred_fallthru
          _
        // Predicated region
        $region17: #{gin_forward_padded.3} parent=11 // pred_check
          %p214 = pneg %p86
        $region18: #{gin_forward_padded.3} parent=11 // pred_check_branch
          %216 = sbr.rel (%p214) target = $region20
        $region19: #{gin_forward_padded.3} parent=11 // pred_region
          _
        $region20: #{gin_forward_padded.3} parent=11 // pred_fallthru
          _
        // Predicated region
        $region21: #{gin_forward_padded.3} parent=11 // pred_check
          %p217 = pneg %p107
        $region22: #{gin_forward_padded.3} parent=11 // pred_check_branch
          %219 = sbr.rel (%p217) target = $region24
        $region23: #{gin_forward_padded.3} parent=11 // pred_region
          _
        $region24: #{gin_forward_padded.3} parent=11 // pred_fallthru
          _
        // Predicated region
        $region25: #{gin_forward_padded.3} parent=11 // pred_check
          %p220 = pneg %p128
        $region26: #{gin_forward_padded.3} parent=11 // pred_check_branch
          %222 = sbr.rel (%p220) target = $region28
        $region27: #{gin_forward_padded.3} parent=11 // pred_region
          _
        $region28: #{gin_forward_padded.3} parent=11 // pred_fallthru
          _
        // Predicated region
        $region29: #{gin_forward_padded.3} parent=11 // pred_check
          %p223 = pneg %p149
        $region30: #{gin_forward_padded.3} parent=11 // pred_check_branch
          %225 = sbr.rel (%p223) target = $region32
        $region31: #{gin_forward_padded.3} parent=11 // pred_region
          %s227 = ssub.s32 128, 128
          %228 = vsyncadd [#allocation3], %s227
          %s230 = sshll.u32 [#allocation2], 4
          %s231 = int_to_ptr.vmem [resolvable:$true] %s230
          %233 = dma.hbm_to_vmem [thread:$0]  %s5, 128, %s231, [#allocation3]
        $region32: #{gin_forward_padded.3} parent=11 // pred_fallthru
          _
        // Predicated region
        $region33: #{gin_forward_padded.3} parent=11 // pred_check
          %p234 = pneg %p170
        $region34: #{gin_forward_padded.3} parent=11 // pred_check_branch
          %236 = sbr.rel (%p234) target = $region36
        $region35: #{gin_forward_padded.3} parent=11 // pred_region
          %s238 = ssub.s32 16, 16
          %239 = vsyncadd [#allocation6], %s238
          %s241 = sshll.u32 [#allocation5], 4
          %s242 = int_to_ptr.vmem [resolvable:$true] %s241
          %244 = dma.hbm_to_vmem [thread:$0]  %s6, 16, %s242, [#allocation6]
        $region36: #{gin_forward_padded.3} parent=11 // pred_fallthru
          _
      $region12: #{gin_forward_padded.3} parent=5 // pred_fallthru
        _
      %p245 = scmp.lt.s32.totalorder %s18, 2
      // Predicated region
      $region37: #{gin_forward_padded.3} parent=5 // pred_check
        %p246 = pneg %p245
      $region38: #{gin_forward_padded.3} parent=5 // pred_check_branch
        %248 = sbr.rel (%p246) target = $region40
      $region39: #{gin_forward_padded.3} parent=5 // pred_region
        // Predicated region
        $region41: #{gin_forward_padded.3} parent=39 // pred_check
          %p249 = pneg %p38
        $region42: #{gin_forward_padded.3} parent=39 // pred_check_branch
          %251 = sbr.rel (%p249) target = $region44
        $region43: #{gin_forward_padded.3} parent=39 // pred_region
          %s252 = smul.u32 4, %s18
          %p253 = scmp.lt.s32.totalorder %s252, 7
          %s254 = scalar_select %p253, %s252, 7
          %s255 = smul.addr %s254, 4
          %s256 = scalar_lea.vmem %s0, %s255
          %s257 = smul.u32 4, %s18
        $region44: #{gin_forward_padded.3} parent=39 // pred_fallthru
          _
      $region40: #{gin_forward_padded.3} parent=5 // pred_fallthru
        _
      %p258 = scmp.le.s32.totalorder 1, %s18
      %p259 = scmp.lt.s32.totalorder %s18, 3
      %p260 = pnand %p258, %p259
      %p261 = pneg %p260
      // Predicated region
      $region45: #{gin_forward_padded.3} parent=5 // pred_check
        _
      $region46: #{gin_forward_padded.3} parent=5 // pred_check_branch
        %263 = sbr.rel (%p260) target = $region48
      $region47: #{gin_forward_padded.3} parent=5 // pred_region
        %s264 = ssub.s32 %s18, 1
        // Predicated region
        $region49: #{gin_forward_padded.3} parent=47 // pred_check
          %p265 = pneg %p149
        $region50: #{gin_forward_padded.3} parent=47 // pred_check_branch
          %267 = sbr.rel (%p265) target = $region52
        $region51: #{gin_forward_padded.3} parent=47 // pred_region
          %268 = dma.done [#allocation3], 128
        $region52: #{gin_forward_padded.3} parent=47 // pred_fallthru
          _
        // Predicated region
        $region53: #{gin_forward_padded.3} parent=47 // pred_check
          %p269 = pneg %p170
        $region54: #{gin_forward_padded.3} parent=47 // pred_check_branch
          %271 = sbr.rel (%p269) target = $region56
        $region55: #{gin_forward_padded.3} parent=47 // pred_region
          %272 = dma.done [#allocation6], 16
        $region56: #{gin_forward_padded.3} parent=47 // pred_fallthru
          _
        %s273 = smul.u32 4, %s23
        %p274 = scmp.lt.s32.totalorder %s273, 7
        %s275 = scalar_select %p274, %s273, 7
        %s276 = smul.addr %s275, 4
        %s277 = scalar_lea.vmem %s0, %s276
        %p278 = pneg %p44
        %p279 = pneg %p41
        %p280 = pneg %p65
        %p281 = pneg %p62
        %p282 = pneg %p86
        %p283 = pneg %p83
        %p284 = pneg %p107
        %p285 = pneg %p104
        %p286 = pneg %p128
        %p287 = pneg %p125
        %p288 = pneg %p149
        %p289 = pneg %p146
        %p290 = pneg %p170
        %p291 = pneg %p167
        %p292 = pneg %p196
        %p293 = pneg %p193
        %s294 = sand.u32 %s183, 1
        %s295 = scalar_lea.sflag [#allocation4], %s294
        %s296 = sand.u32 %s183, 1
        %s297 = smul.addr %s296, 32
        %s298 = scalar_lea.vmem [#allocation7], %s297
        %s299 = smul.u32 4, %s23
        %p300 = scmp.lt.s32.totalorder %s299, 7
        %s301 = scalar_select %p300, %s299, 7
        %s302 = smul.addr %s301, 4
        %s303 = scalar_lea.vmem %s0, %s302
        %s304 = smul.u32 4, %s23
        %s305 = smul.u32 4, %s23
        %v307 = vld [vmem:[%s303] sm:$0xf]
        %v308 = vld [vmem:[%s303 + $0x4] sm:$0xf]
        %v309 = vld [vmem:[%s303 + $0x8] sm:$0xf]
        %v310 = vld [vmem:[%s303 + $0xc] sm:$0xf]
        %v311 = vld [vmem:[%s1] sm:$0xf]
        %v312 = vld [vmem:[%s1 + $0x4] sm:$0xf]
        %v313 = vld [vmem:[%s1 + $0x8] sm:$0xf]
        %v314 = vld [vmem:[%s1 + $0xc] sm:$0xf]
        %v315 = vld [vmem:[%s1 + $0x10] sm:$0xf]
        %v316 = vld [vmem:[%s1 + $0x14] sm:$0xf]
        %v317 = vld [vmem:[%s1 + $0x18] sm:$0xf]
        %v318 = vld [vmem:[%s1 + $0x1c] sm:$0xf]
        %v323 = vunpack.c.l.b16 %v307
        %v324 = vunpack.c.l.b16 %v308
        %v325 = vunpack.c.l.b16 %v309
        %v326 = vunpack.c.l.b16 %v310
        %v327 = vpack.c.b16 %v324, %v323
        %v328 = vpack.c.b16 %v326, %v325
        %v337 = vunpack.c.l.b16 %v311
        %v338 = vunpack.c.l.b16 %v312
        %v339 = vunpack.c.l.b16 %v313
        %v340 = vunpack.c.l.b16 %v314
        %v341 = vunpack.c.l.b16 %v315
        %v342 = vunpack.c.l.b16 %v316
        %v343 = vunpack.c.l.b16 %v317
        %v344 = vunpack.c.l.b16 %v318
        %v345 = vpack.c.b16 %v338, %v337
        %v346 = vpack.c.b16 %v340, %v339
        %v347 = vpack.c.b16 %v342, %v341
        %v348 = vpack.c.b16 %v344, %v343
        %vm353 = vcmask 523264
        %v355 = vsel %vm353, %v327, 0
        %v358 = vsel %vm353, %v328, 0
        %360 = vmatprep.subr.bf16.mxu0 0
        %361 = vmatpush1.bf16.msra.mxu0 0
        %362 = vmatprep.subr.bf16.mxu0 0
        %363 = vmatpush1.bf16.msra.mxu0 0
        %364 = vmatprep.subr.bf16.mxu0 0
        %365 = vmatpush1.bf16.msra.mxu0 0
        %366 = vmatprep.subr.bf16.mxu0 0
        %367 = vmatpush1.bf16.msra.mxu0 0
        %368 = vmatprep.subr.bf16.mxu0 0
        %369 = vmatpush1.bf16.msra.mxu0 %v348
        %370 = vmatprep.subr.bf16.mxu0 0
        %371 = vmatpush1.bf16.msra.mxu0 %v347
        %372 = vmatprep.subr.bf16.mxu0 0
        %373 = vmatpush1.bf16.msra.mxu0 %v346
        %374 = vmatprep.subr.bf16.mxu0 0
        %375 = vmatpush1.bf16.msra.mxu0 %v345
        %376 = vmatprep.subr.bf16.mxu0 0
        %377 = vmatpush2.bf16.msra.mxu0 0
        %378 = vmatprep.subr.bf16.mxu0 0
        %379 = vmatpush2.bf16.msra.mxu0 0
        %380 = vmatprep.subr.bf16.mxu0 0
        %381 = vmatpush2.bf16.msra.mxu0 0
        %382 = vmatprep.subr.bf16.mxu0 0
        %383 = vmatpush2.bf16.msra.mxu0 0
        %384 = vmatprep.subr.bf16.mxu0 0
        %385 = vmatpush2.bf16.msra.mxu0 0
        %386 = vmatprep.subr.bf16.mxu0 0
        %387 = vmatpush2.bf16.msra.mxu0 0
        %388 = vmatprep.subr.bf16.mxu0 0
        %389 = vmatpush2.bf16.msra.mxu0 0
        %390 = vmatprep.subr.bf16.mxu0 0
        %391 = vmatpush2.bf16.msra.mxu0 0
        %392 = vmatprep.mubr.bf16.mxu0 0
        %393 = vmatmul.mubr.bf16.gmra.mxu0 %v355
        %v394 = vpop.f32.mrf.mxu0
        %v395 = vadd.f32 0.0, %v394
        %v396 = vpop.f32.mrf.mxu0
        %v397 = vpop.f32.mrf.mxu0
        %v398 = vadd.f32 0.0, %v397
        %v399 = vpop.f32.mrf.mxu0
        %400 = vmatprep.mubr.bf16.mxu0 0
        %401 = vmatmul.mubr.bf16.gmra.mxu0 %v358
        %v402 = vpop.f32.mrf.mxu0
        %v403 = vadd.f32 0.0, %v402
        %v404 = vpop.f32.mrf.mxu0
        %v405 = vpop.f32.mrf.mxu0
        %v406 = vadd.f32 0.0, %v405
        %v407 = vpop.f32.mrf.mxu0
        %408 = vdwg.mxu0
        %v409 = vpack.c.bf16 %v398, %v395
        %v410 = vpack.c.bf16 %v406, %v403
        %v411 = vld [vmem:[%s2] sm:$0xf]
        %v412 = vld [vmem:[%s2 + $0x4] sm:$0xf]
        %v413 = vld [vmem:[%s2 + $0x8] sm:$0xf]
        %v414 = vld [vmem:[%s2 + $0xc] sm:$0xf]
        %v415 = vld [vmem:[%s2 + $0x10] sm:$0xf]
        %v416 = vld [vmem:[%s2 + $0x14] sm:$0xf]
        %v417 = vld [vmem:[%s2 + $0x18] sm:$0xf]
        %v418 = vld [vmem:[%s2 + $0x1c] sm:$0xf]
        %v419 = vld [vmem:[%s2 + $0x20] sm:$0xf]
        %v420 = vld [vmem:[%s2 + $0x24] sm:$0xf]
        %v421 = vld [vmem:[%s2 + $0x28] sm:$0xf]
        %v422 = vld [vmem:[%s2 + $0x2c] sm:$0xf]
        %v423 = vld [vmem:[%s2 + $0x30] sm:$0xf]
        %v424 = vld [vmem:[%s2 + $0x34] sm:$0xf]
        %v425 = vld [vmem:[%s2 + $0x38] sm:$0xf]
        %v426 = vld [vmem:[%s2 + $0x3c] sm:$0xf]
        %v427 = vld [vmem:[#allocation2] sm:$0x1]
        %v428 = vlaneseq
        %v429 = vshrl.u32 %v428, 7
        %v430 = vsub.s32 0, %v429
        %v431 = vrot.slane %v427, %v430
        %v448 = vunpack.c.l.b16 %v411
        %v449 = vunpack.c.l.b16 %v412
        %v450 = vunpack.c.l.b16 %v413
        %v451 = vunpack.c.l.b16 %v414
        %v452 = vunpack.c.l.b16 %v415
        %v453 = vunpack.c.l.b16 %v416
        %v454 = vunpack.c.l.b16 %v417
        %v455 = vunpack.c.l.b16 %v418
        %v456 = vunpack.c.l.b16 %v419
        %v457 = vunpack.c.l.b16 %v420
        %v458 = vunpack.c.l.b16 %v421
        %v459 = vunpack.c.l.b16 %v422
        %v460 = vunpack.c.l.b16 %v423
        %v461 = vunpack.c.l.b16 %v424
        %v462 = vunpack.c.l.b16 %v425
        %v463 = vunpack.c.l.b16 %v426
        %v464 = vpack.c.b16 %v449, %v448
        %v465 = vpack.c.b16 %v451, %v450
        %v466 = vpack.c.b16 %v453, %v452
        %v467 = vpack.c.b16 %v455, %v454
        %v468 = vpack.c.b16 %v457, %v456
        %v469 = vpack.c.b16 %v459, %v458
        %v470 = vpack.c.b16 %v461, %v460
        %v471 = vpack.c.b16 %v463, %v462
        %480 = vmatprep.subr.bf16.mxu0 0
        %481 = vmatpush1.bf16.msra.mxu0 %v471
        %482 = vmatprep.subr.bf16.mxu0 0
        %483 = vmatpush1.bf16.msra.mxu0 %v470
        %484 = vmatprep.subr.bf16.mxu0 0
        %485 = vmatpush1.bf16.msra.mxu0 %v469
        %486 = vmatprep.subr.bf16.mxu0 0
        %487 = vmatpush1.bf16.msra.mxu0 %v468
        %488 = vmatprep.subr.bf16.mxu0 0
        %489 = vmatpush1.bf16.msra.mxu0 %v467
        %490 = vmatprep.subr.bf16.mxu0 0
        %491 = vmatpush1.bf16.msra.mxu0 %v466
        %492 = vmatprep.subr.bf16.mxu0 0
        %493 = vmatpush1.bf16.msra.mxu0 %v465
        %494 = vmatprep.subr.bf16.mxu0 0
        %495 = vmatpush1.bf16.msra.mxu0 %v464
        %496 = vmatprep.subr.bf16.mxu0 0
        %497 = vmatpush2.bf16.msra.mxu0 0
        %498 = vmatprep.subr.bf16.mxu0 0
        %499 = vmatpush2.bf16.msra.mxu0 0
        %500 = vmatprep.subr.bf16.mxu0 0
        %501 = vmatpush2.bf16.msra.mxu0 0
        %502 = vmatprep.subr.bf16.mxu0 0
        %503 = vmatpush2.bf16.msra.mxu0 0
        %504 = vmatprep.subr.bf16.mxu0 0
        %505 = vmatpush2.bf16.msra.mxu0 0
        %506 = vmatprep.subr.bf16.mxu0 0
        %507 = vmatpush2.bf16.msra.mxu0 0
        %508 = vmatprep.subr.bf16.mxu0 0
        %509 = vmatpush2.bf16.msra.mxu0 0
        %510 = vmatprep.subr.bf16.mxu0 0
        %511 = vmatpush2.bf16.msra.mxu0 0
        %512 = vmatprep.mubr.bf16.mxu0 0
        %513 = vmatmul.mubr.bf16.gmra.mxu0 %v409
        %v514 = vpop.f32.mrf.mxu0
        %v515 = vadd.f32 %v431, %v514
        %v516 = vpop.f32.mrf.mxu0
        %v517 = vpop.f32.mrf.mxu0
        %v518 = vadd.f32 %v431, %v517
        %v519 = vpop.f32.mrf.mxu0
        %520 = vmatprep.mubr.bf16.mxu0 0
        %521 = vmatmul.mubr.bf16.gmra.mxu0 %v410
        %v522 = vpop.f32.mrf.mxu0
        %v523 = vadd.f32 %v431, %v522
        %v524 = vpop.f32.mrf.mxu0
        %v525 = vpop.f32.mrf.mxu0
        %v526 = vadd.f32 %v431, %v525
        %v527 = vpop.f32.mrf.mxu0
        %528 = vdwg.mxu0
        %v529 = vmax.f32 %v515, 0.0
        %v530 = vmax.f32 %v518, 0.0
        %v531 = vmax.f32 %v523, 0.0
        %v532 = vmax.f32 %v526, 0.0
        %v533 = vpack.c.bf16 %v530, %v529
        %v534 = vpack.c.bf16 %v532, %v531
        %v535 = vld [vmem:[%s3] sm:$0xf]
        %v536 = vld [vmem:[%s3 + $0x4] sm:$0xf]
        %v537 = vld [vmem:[%s3 + $0x8] sm:$0xf]
        %v538 = vld [vmem:[%s3 + $0xc] sm:$0xf]
        %v539 = vld [vmem:[%s3 + $0x10] sm:$0xf]
        %v540 = vld [vmem:[%s3 + $0x14] sm:$0xf]
        %v541 = vld [vmem:[%s3 + $0x18] sm:$0xf]
        %v542 = vld [vmem:[%s3 + $0x1c] sm:$0xf]
        %v543 = vld [vmem:[%s3 + $0x20] sm:$0xf]
        %v544 = vld [vmem:[%s3 + $0x24] sm:$0xf]
        %v545 = vld [vmem:[%s3 + $0x28] sm:$0xf]
        %v546 = vld [vmem:[%s3 + $0x2c] sm:$0xf]
        %v547 = vld [vmem:[%s3 + $0x30] sm:$0xf]
        %v548 = vld [vmem:[%s3 + $0x34] sm:$0xf]
        %v549 = vld [vmem:[%s3 + $0x38] sm:$0xf]
        %v550 = vld [vmem:[%s3 + $0x3c] sm:$0xf]
        %v551 = vld [vmem:[#allocation2 + $0x1] sm:$0x1]
        %v552 = vlaneseq
        %v553 = vshrl.u32 %v552, 7
        %v554 = vsub.s32 0, %v553
        %v555 = vrot.slane %v551, %v554
        %v572 = vunpack.c.l.b16 %v535
        %v573 = vunpack.c.l.b16 %v536
        %v574 = vunpack.c.l.b16 %v537
        %v575 = vunpack.c.l.b16 %v538
        %v576 = vunpack.c.l.b16 %v539
        %v577 = vunpack.c.l.b16 %v540
        %v578 = vunpack.c.l.b16 %v541
        %v579 = vunpack.c.l.b16 %v542
        %v580 = vunpack.c.l.b16 %v543
        %v581 = vunpack.c.l.b16 %v544
        %v582 = vunpack.c.l.b16 %v545
        %v583 = vunpack.c.l.b16 %v546
        %v584 = vunpack.c.l.b16 %v547
        %v585 = vunpack.c.l.b16 %v548
        %v586 = vunpack.c.l.b16 %v549
        %v587 = vunpack.c.l.b16 %v550
        %v588 = vpack.c.b16 %v573, %v572
        %v589 = vpack.c.b16 %v575, %v574
        %v590 = vpack.c.b16 %v577, %v576
        %v591 = vpack.c.b16 %v579, %v578
        %v592 = vpack.c.b16 %v581, %v580
        %v593 = vpack.c.b16 %v583, %v582
        %v594 = vpack.c.b16 %v585, %v584
        %v595 = vpack.c.b16 %v587, %v586
        %604 = vmatprep.subr.bf16.mxu0 0
        %605 = vmatpush1.bf16.msra.mxu0 %v595
        %606 = vmatprep.subr.bf16.mxu0 0
        %607 = vmatpush1.bf16.msra.mxu0 %v594
        %608 = vmatprep.subr.bf16.mxu0 0
        %609 = vmatpush1.bf16.msra.mxu0 %v593
        %610 = vmatprep.subr.bf16.mxu0 0
        %611 = vmatpush1.bf16.msra.mxu0 %v592
        %612 = vmatprep.subr.bf16.mxu0 0
        %613 = vmatpush1.bf16.msra.mxu0 %v591
        %614 = vmatprep.subr.bf16.mxu0 0
        %615 = vmatpush1.bf16.msra.mxu0 %v590
        %616 = vmatprep.subr.bf16.mxu0 0
        %617 = vmatpush1.bf16.msra.mxu0 %v589
        %618 = vmatprep.subr.bf16.mxu0 0
        %619 = vmatpush1.bf16.msra.mxu0 %v588
        %620 = vmatprep.subr.bf16.mxu0 0
        %621 = vmatpush2.bf16.msra.mxu0 0
        %622 = vmatprep.subr.bf16.mxu0 0
        %623 = vmatpush2.bf16.msra.mxu0 0
        %624 = vmatprep.subr.bf16.mxu0 0
        %625 = vmatpush2.bf16.msra.mxu0 0
        %626 = vmatprep.subr.bf16.mxu0 0
        %627 = vmatpush2.bf16.msra.mxu0 0
        %628 = vmatprep.subr.bf16.mxu0 0
        %629 = vmatpush2.bf16.msra.mxu0 0
        %630 = vmatprep.subr.bf16.mxu0 0
        %631 = vmatpush2.bf16.msra.mxu0 0
        %632 = vmatprep.subr.bf16.mxu0 0
        %633 = vmatpush2.bf16.msra.mxu0 0
        %634 = vmatprep.subr.bf16.mxu0 0
        %635 = vmatpush2.bf16.msra.mxu0 0
        %636 = vmatprep.mubr.bf16.mxu0 0
        %637 = vmatmul.mubr.bf16.gmra.mxu0 %v533
        %v638 = vpop.f32.mrf.mxu0
        %v639 = vadd.f32 %v555, %v638
        %v640 = vpop.f32.mrf.mxu0
        %v641 = vpop.f32.mrf.mxu0
        %v642 = vadd.f32 %v555, %v641
        %v643 = vpop.f32.mrf.mxu0
        %644 = vmatprep.mubr.bf16.mxu0 0
        %645 = vmatmul.mubr.bf16.gmra.mxu0 %v534
        %v646 = vpop.f32.mrf.mxu0
        %v647 = vadd.f32 %v555, %v646
        %v648 = vpop.f32.mrf.mxu0
        %v649 = vpop.f32.mrf.mxu0
        %v650 = vadd.f32 %v555, %v649
        %v651 = vpop.f32.mrf.mxu0
        %652 = vdwg.mxu0
        %v653 = vmax.f32 %v639, 0.0
        %v654 = vmax.f32 %v642, 0.0
        %v655 = vmax.f32 %v647, 0.0
        %v656 = vmax.f32 %v650, 0.0
        %v657 = vpack.c.bf16 %v654, %v653
        %v658 = vpack.c.bf16 %v656, %v655
        %v659 = vld [vmem:[%s4] sm:$0xf]
        %v660 = vld [vmem:[%s4 + $0x4] sm:$0xf]
        %v661 = vld [vmem:[%s4 + $0x8] sm:$0xf]
        %v662 = vld [vmem:[%s4 + $0xc] sm:$0xf]
        %v663 = vld [vmem:[%s4 + $0x10] sm:$0xf]
        %v664 = vld [vmem:[%s4 + $0x14] sm:$0xf]
        %v665 = vld [vmem:[%s4 + $0x18] sm:$0xf]
        %v666 = vld [vmem:[%s4 + $0x1c] sm:$0xf]
        %v667 = vld [vmem:[%s4 + $0x20] sm:$0xf]
        %v668 = vld [vmem:[%s4 + $0x24] sm:$0xf]
        %v669 = vld [vmem:[%s4 + $0x28] sm:$0xf]
        %v670 = vld [vmem:[%s4 + $0x2c] sm:$0xf]
        %v671 = vld [vmem:[%s4 + $0x30] sm:$0xf]
        %v672 = vld [vmem:[%s4 + $0x34] sm:$0xf]
        %v673 = vld [vmem:[%s4 + $0x38] sm:$0xf]
        %v674 = vld [vmem:[%s4 + $0x3c] sm:$0xf]
        %v675 = vld [vmem:[#allocation5] sm:$0x1]
        %v677 = vlaneseq
        %v678 = vshrl.u32 %v677, 7
        %v679 = vsub.s32 0, %v678
        %v680 = vrot.slane %v675, %v679
        %v698 = vunpack.c.l.b16 %v659
        %v699 = vunpack.c.l.b16 %v660
        %v700 = vunpack.c.l.b16 %v661
        %v701 = vunpack.c.l.b16 %v662
        %v702 = vunpack.c.l.b16 %v663
        %v703 = vunpack.c.l.b16 %v664
        %v704 = vunpack.c.l.b16 %v665
        %v705 = vunpack.c.l.b16 %v666
        %v706 = vunpack.c.l.b16 %v667
        %v707 = vunpack.c.l.b16 %v668
        %v708 = vunpack.c.l.b16 %v669
        %v709 = vunpack.c.l.b16 %v670
        %v710 = vunpack.c.l.b16 %v671
        %v711 = vunpack.c.l.b16 %v672
        %v712 = vunpack.c.l.b16 %v673
        %v713 = vunpack.c.l.b16 %v674
        %v714 = vpack.c.b16 %v699, %v698
        %v715 = vpack.c.b16 %v701, %v700
        %v716 = vpack.c.b16 %v703, %v702
        %v717 = vpack.c.b16 %v705, %v704
        %v718 = vpack.c.b16 %v707, %v706
        %v719 = vpack.c.b16 %v709, %v708
        %v720 = vpack.c.b16 %v711, %v710
        %v721 = vpack.c.b16 %v713, %v712
        %730 = vmatprep.subr.bf16.mxu0 0
        %731 = vmatpush1.bf16.msra.mxu0 %v721
        %732 = vmatprep.subr.bf16.mxu0 0
        %733 = vmatpush1.bf16.msra.mxu0 %v720
        %734 = vmatprep.subr.bf16.mxu0 0
        %735 = vmatpush1.bf16.msra.mxu0 %v719
        %736 = vmatprep.subr.bf16.mxu0 0
        %737 = vmatpush1.bf16.msra.mxu0 %v718
        %738 = vmatprep.subr.bf16.mxu0 0
        %739 = vmatpush1.bf16.msra.mxu0 %v717
        %740 = vmatprep.subr.bf16.mxu0 0
        %741 = vmatpush1.bf16.msra.mxu0 %v716
        %742 = vmatprep.subr.bf16.mxu0 0
        %743 = vmatpush1.bf16.msra.mxu0 %v715
        %744 = vmatprep.subr.bf16.mxu0 0
        %745 = vmatpush1.bf16.msra.mxu0 %v714
        %746 = vmatprep.subr.bf16.mxu0 0
        %747 = vmatpush2.bf16.msra.mxu0 0
        %748 = vmatprep.subr.bf16.mxu0 0
        %749 = vmatpush2.bf16.msra.mxu0 0
        %750 = vmatprep.subr.bf16.mxu0 0
        %751 = vmatpush2.bf16.msra.mxu0 0
        %752 = vmatprep.subr.bf16.mxu0 0
        %753 = vmatpush2.bf16.msra.mxu0 0
        %754 = vmatprep.subr.bf16.mxu0 0
        %755 = vmatpush2.bf16.msra.mxu0 0
        %756 = vmatprep.subr.bf16.mxu0 0
        %757 = vmatpush2.bf16.msra.mxu0 0
        %758 = vmatprep.subr.bf16.mxu0 0
        %759 = vmatpush2.bf16.msra.mxu0 0
        %760 = vmatprep.subr.bf16.mxu0 0
        %761 = vmatpush2.bf16.msra.mxu0 0
        %762 = vmatprep.mubr.bf16.mxu0 0
        %763 = vmatmul.mubr.bf16.gmra.mxu0 %v657
        %v764 = vpop.f32.mrf.mxu0
        %v765 = vadd.f32 %v680, %v764
        %v766 = vpop.f32.mrf.mxu0
        %v767 = vpop.f32.mrf.mxu0
        %v768 = vadd.f32 %v680, %v767
        %v769 = vpop.f32.mrf.mxu0
        %770 = vmatprep.mubr.bf16.mxu0 0
        %771 = vmatmul.mubr.bf16.gmra.mxu0 %v658
        %v772 = vpop.f32.mrf.mxu0
        %v773 = vadd.f32 %v680, %v772
        %v774 = vpop.f32.mrf.mxu0
        %v775 = vpop.f32.mrf.mxu0
        %v776 = vadd.f32 %v680, %v775
        %v777 = vpop.f32.mrf.mxu0
        %778 = vdwg.mxu0
        %779 = vmax.xlane.f32.xlu0 %v765
        %v780 = vpop.xlane.xlu0 %779
        %781 = vmax.xlane.f32.xlu0 %v768
        %v782 = vpop.xlane.xlu0 %781
        %783 = vmax.xlane.f32.xlu0 %v773
        %v784 = vpop.xlane.xlu0 %783
        %785 = vmax.xlane.f32.xlu0 %v776
        %v786 = vpop.xlane.xlu0 %785
        %v787 = vsub.f32 %v765, %v780
        %v788 = vsub.f32 %v768, %v782
        %v789 = vsub.f32 %v773, %v784
        %v790 = vsub.f32 %v776, %v786
        %v791 = vmul.f32 %v787, 1.442695
        %v792 = vpow.pop %v791
        %v793 = vmul.f32 %v788, 1.442695
        %v794 = vpow.pop %v793
        %v795 = vmul.f32 %v789, 1.442695
        %v796 = vpow.pop %v795
        %v797 = vmul.f32 %v790, 1.442695
        %v798 = vpow.pop %v797
        %799 = vadd.xlane.f32.xlu0 %v792
        %v800 = vpop.xlane.xlu0 %799
        %801 = vadd.xlane.f32.xlu0 %v794
        %v802 = vpop.xlane.xlu0 %801
        %803 = vadd.xlane.f32.xlu0 %v796
        %v804 = vpop.xlane.xlu0 %803
        %805 = vadd.xlane.f32.xlu0 %v798
        %v806 = vpop.xlane.xlu0 %805
        %v807 = vlog2.pop %v800
        %v808 = vmul.f32 %v807, 0.6931472
        %v809 = vlog2.pop %v802
        %v810 = vmul.f32 %v809, 0.6931472
        %v811 = vlog2.pop %v804
        %v812 = vmul.f32 %v811, 0.6931472
        %v813 = vlog2.pop %v806
        %v814 = vmul.f32 %v813, 0.6931472
        %v815 = vsub.f32 %v787, %v808
        %v816 = vsub.f32 %v788, %v810
        %v817 = vsub.f32 %v789, %v812
        %v818 = vsub.f32 %v790, %v814
        %819 = vst [vmem:[%s298] sm:$0xff] %v815
        %820 = vst [vmem:[%s298 + $0x8] sm:$0xff] %v816
        %821 = vst [vmem:[%s298 + $0x10] sm:$0xff] %v817
        %822 = vst [vmem:[%s298 + $0x18] sm:$0xff] %v818
        %s823 = sand.u32 %s183, 1
        %s824 = scalar_lea.sflag [#allocation4], %s823
        %s825 = sand.u32 %s183, 1
        %s826 = smul.addr %s825, 32
        %s827 = scalar_lea.vmem [#allocation7], %s826
        // Predicated region
        $region57: #{gin_forward_padded.3} parent=47 // pred_check
          %p828 = pneg %p193
        $region58: #{gin_forward_padded.3} parent=47 // pred_check_branch
          %830 = sbr.rel (%p828) target = $region60
        $region59: #{gin_forward_padded.3} parent=47 // pred_region
          %s831 = smul.u32 4, %s23
          %s833 = ssub.s32 512, 512
          %834 = vsyncadd %s824, %s833
          %s835 = smul.addr %s831, 128
          %s836 = scalar_lea.hbm %s7, %s835
          %s837 = sshll.u32 %s827, 4
          %s838 = int_to_ptr.vmem [resolvable:$true] %s837
          %843 = dma.vmem_to_hbm [thread:$0]  %s838, 512, %s836, %s824, 128, 128, 8
        $region60: #{gin_forward_padded.3} parent=47 // pred_fallthru
          _
      $region48: #{gin_forward_padded.3} parent=5 // pred_fallthru
        _
      %p844 = scmp.le.s32.totalorder 2, %s18
      // Predicated region
      $region61: #{gin_forward_padded.3} parent=5 // pred_check
        %p845 = pneg %p844
      $region62: #{gin_forward_padded.3} parent=5 // pred_check_branch
        %847 = sbr.rel (%p845) target = $region64
      $region63: #{gin_forward_padded.3} parent=5 // pred_region
        %s848 = ssub.s32 %s18, 2
        // Predicated region
        $region65: #{gin_forward_padded.3} parent=63 // pred_check
          %p849 = pneg %p199
        $region66: #{gin_forward_padded.3} parent=63 // pred_check_branch
          %851 = sbr.rel (%p849) target = $region68
        $region67: #{gin_forward_padded.3} parent=63 // pred_region
          %s852 = sand.u32 %s184, 1
          %s853 = scalar_lea.sflag [#allocation4], %s852
          %s854 = sand.u32 %s184, 1
          %s855 = smul.addr %s854, 32
          %s856 = scalar_lea.vmem [#allocation7], %s855
          %857 = dma.done %s853, 512
        $region68: #{gin_forward_padded.3} parent=63 // pred_fallthru
          _
      $region64: #{gin_forward_padded.3} parent=5 // pred_fallthru
        _
    $region6: #{gin_forward_padded.3} parent=1 // loop_footer
      %s22 = sadd.s32 1, %s18
    $region7: #{gin_forward_padded.3} parent=1 // loop_footer_branch
      %17 = sbr.rel target = $region3
    $region8: #{gin_forward_padded.3} parent=1 // loop_exit
      _
    %858 = vsyncpa [#allocation3], 1
    %s859 = scalar_lea.sflag [#allocation3], 1
    %860 = vsyncpa %s859, 1
    %861 = vsyncpa [#allocation6], 1
    %862 = vsyncpa [#allocation4], 1
    %s863 = scalar_lea.sflag [#allocation4], 1
    %864 = vsyncpa %s863, 1

</llo_original>
